<compile_context>
chip_gen: v7x
topology: tpu7x:2x2x1
jax: 0.10.0
libtpu: 0.0.40
codegen_flags: <defaults>
</compile_context>

<pallas_src>
import math

import jax
import jax.numpy as jnp
import numpy as np
from jax.experimental import pallas as pl
from jax.experimental.pallas import tpu as pltpu


def dsn_kernel(xc_ref,    # (T*B, 2D)  time-major rows; cols = [x_t | x_{T-1-t}]
               wih_ref,   # (2D, 8H)   fused input weights, gate cols [i|f|o|g],
               whh_ref,   # (2H, 8H)   each gate block = [fwd H | bwd H]
               b_ref,     # (1, 8H)    fused gate bias (bih + bhh, both directions)
               wout_ref,  # (1, 2H)    folded fc2∘fc1 weight ([fwd H | bwd H])
               bout_ref,  # (1, 1)     folded fc2∘fc1 bias
               out_ref,   # (B, T)
               xg_ref):   # scratch (T, B, 8H): hoisted input projections (+ bias)
    B, T = out_ref.shape
    H2 = whh_ref.shape[0]
    H = H2 // 2

    # 1) Hoisted input projection: one well-shaped matmul covers both directions
    #    and every timestep; gate bias folded in here (not re-added per step).
    #    Scatter once into a (T, B, 8H) scratch so per-step reads are clean
    #    leading-axis indexed slabs.
    xg = (jnp.dot(xc_ref[...], wih_ref[...],
                  preferred_element_type=jnp.float32) + b_ref[...])   # (T*B, 8H)
    for t in range(T):
        xg_ref[t] = xg[t * B:(t + 1) * B, :]

    # Hoisted loop invariants (avoid per-iteration reload / broadcast_in_dim).
    whh = whh_ref[...]                                       # (2H, 8H)
    wout = jnp.broadcast_to(wout_ref[...], (B, H2))          # (B, 2H)
    bout = bout_ref[...]                                     # (1, 1)

    h = jnp.zeros((B, H2), jnp.float32)   # [h_fwd | h_bwd]
    c = jnp.zeros((B, H2), jnp.float32)   # [c_fwd | c_bwd]
    y_fwd = [None] * T   # output contribution of the forward direction at time t
    y_bwd = [None] * T   # backward-direction contribution (lands at time T-1-t)

    # 2) Fully unrolled recurrence (T static & tiny): one block-diagonal MXU op
    #    per step drives both directions' gates.
    # TODO(synk): if the bundle dump shows Mosaic re-pushing the (2H,8H) RHS each
    # step, switch to weight-stationary pltpu.matmul_push_rhs/matmul_acc_lhs; for
    # production T replace the Python unroll with lax.fori_loop(..., unroll=k).
    # TODO(synk): for production sizes, cast MXU operands to bf16 (keeping state
    # and gate math in f32) — deferred here because it exceeds the strict
    # rtol=1e-3/atol=1e-4 check over the T-step recurrence.
    for t in range(T):
        gates = xg_ref[t] + jnp.dot(h, whh,
                                    preferred_element_type=jnp.float32)  # (B, 8H)
        sig = jax.nn.sigmoid(gates[:, :6 * H])     # i|f|o in one contiguous EUP pass
        g = jnp.tanh(gates[:, 6 * H:])             # tanh only on the g block
        c = sig[:, 2 * H:4 * H] * c + sig[:, 0:2 * H] * g
        h = sig[:, 4 * H:6 * H] * jnp.tanh(c)
        # 3) fc2∘fc1 folded into the recurrence: per-direction multiply +
        #    cross-lane reduce (VPU/XLU slots have slack under the serial chain).
        hw = h * wout                                               # (B, 2H)
        y_fwd[t] = jnp.sum(hw[:, :H], axis=-1, keepdims=True)       # (B, 1)
        y_bwd[t] = jnp.sum(hw[:, H:], axis=-1, keepdims=True)       # (B, 1)

    # 4) Assemble the (B, T) output: fwd step t + bwd step T-1-t, one final
    #    sigmoid, one tiny store (no per-step masked stores remain).
    y = jnp.concatenate([y_fwd[t] + y_bwd[T - 1 - t] for t in range(T)], axis=1)
    out_ref[...] = jax.nn.sigmoid(y + bout)


def dsn_forward(x, params):
    """x: (B, T, D) batch_first like the PyTorch module. Returns (B, T, 1)."""
    B, T, D = x.shape
    H = params["whh_f"].shape[1]
    H2, H8 = 2 * H, 8 * H

    x_tm = jnp.transpose(x.astype(jnp.float32), (1, 0, 2))      # (T, B, D)
    # Per-step inputs for both directions: [x_t | x_{T-1-t}].
    # TODO(synk): at production D, drop this concatenation and the half-zero
    # block-diagonal wih (run two K=D projection matmuls instead); keep the
    # block-diagonal trick only for the latency-critical whh matmul.
    x_comb = jnp.concatenate([x_tm, x_tm[::-1]], axis=-1).reshape(T * B, 2 * D)

    GATE_PERM = [0, 1, 3, 2]   # PyTorch gate order [i|f|g|o] -> fused [i|f|o|g]

    def fuse_gate_weights(wf_T, wb_T):
        # wf_T / wb_T: (R, 4H) with gate column blocks in PyTorch order [i|f|g|o].
        # Returns (2R, 8H): gate-major columns [i|f|o|g], each block = [fwd H|bwd H],
        # rows [fwd inputs ; bwd inputs] (block-diagonal w.r.t. direction).
        R = wf_T.shape[0]
        wf = wf_T.reshape(R, 4, H).astype(jnp.float32)[:, GATE_PERM, :]
        wb = wb_T.reshape(R, 4, H).astype(jnp.float32)[:, GATE_PERM, :]
        w = jnp.zeros((2 * R, 4, H2), jnp.float32)
        w = w.at[:R, :, :H].set(wf)
        w = w.at[R:, :, H:].set(wb)
        return w.reshape(2 * R, H8)

    wih_comb = fuse_gate_weights(params["wih_f"].T, params["wih_b"].T)   # (2D, 8H)
    whh_comb = fuse_gate_weights(params["whh_f"].T, params["whh_b"].T)   # (2H, 8H)

    bf = (params["bih_f"] + params["bhh_f"]).reshape(4, H)[GATE_PERM, :]
    bb = (params["bih_b"] + params["bhh_b"]).reshape(4, H)[GATE_PERM, :]
    b_comb = jnp.concatenate([bf, bb], axis=-1).reshape(1, H8).astype(jnp.float32)

    # Fold fc2 and fc1 (no nonlinearity between them) into a single affine map.
    w_out = (params["w2"].T @ params["w1"].T).reshape(1, H2).astype(jnp.float32)
    b_out = (params["b2"] @ params["w1"].T + params["b1"]).reshape(1, 1).astype(jnp.float32)

    out = pl.pallas_call(
        dsn_kernel,
        out_shape=jax.ShapeDtypeStruct((B, T), jnp.float32),
        in_specs=[pl.BlockSpec(memory_space=pltpu.MemorySpace.VMEM)] * 6,
        out_specs=pl.BlockSpec(memory_space=pltpu.MemorySpace.VMEM),
        scratch_shapes=[
            pltpu.VMEM((T, B, H8), jnp.float32),   # xg: hoisted input projections
        ],
    )(x_comb, wih_comb, whh_comb, b_comb, w_out, b_out)

    # TODO(synk): for production sizes (large T*B*H) tile T with a grid +
    # BlockSpec (and chunk the hoisted projection) instead of full-sequence VMEM
    # residency — mandatory on v7x's 64 MiB VMEM — and add a "parallel" batch
    # grid axis so v7x's two TensorCores each take half the batch.
    return out[..., None]   # (B, T, 1)


def dsn_ref(x, params):
    """Pure-JAX reference (mirrors torch.nn.LSTM / Linear semantics)."""
    x = x.astype(jnp.float32)
    B, T, D = x.shape
    H = params["whh_f"].shape[1]

    def run_dir(wih, whh, bih, bhh, xs):
        def step(carry, x_t):
            h, c = carry
            gates = x_t @ wih.T + bih + h @ whh.T + bhh
            i, f, g, o = jnp.split(gates, 4, axis=-1)
            i = jax.nn.sigmoid(i)
            f = jax.nn.sigmoid(f)
            g = jnp.tanh(g)
            o = jax.nn.sigmoid(o)
            c = f * c + i * g
            h = o * jnp.tanh(c)
            return (h, c), h
        init = (jnp.zeros((B, H), jnp.float32), jnp.zeros((B, H), jnp.float32))
        _, hs = jax.lax.scan(step, init, jnp.transpose(xs, (1, 0, 2)))
        return jnp.transpose(hs, (1, 0, 2))  # (B, T, H)

    hf = run_dir(params["wih_f"], params["whh_f"], params["bih_f"], params["bhh_f"], x)
    hb = run_dir(params["wih_b"], params["whh_b"], params["bih_b"], params["bhh_b"],
                 x[:, ::-1])[:, ::-1]
    h = jnp.concatenate([hf, hb], axis=-1)
    y = h @ params["w2"].T + params["b2"]
    y = y @ params["w1"].T + params["b1"]
    return jax.nn.sigmoid(y)


if __name__ == "__main__":
    # Small shapes consistent with the module: batch=2, seq=8, in_dim=19, hid_dim=32
    B, T, D, H = 2, 8, 19, 32
    key = jax.random.PRNGKey(0)
    keys = jax.random.split(key, 13)

    def u(k, shape, scale):
        return jax.random.uniform(k, shape, jnp.float32, -scale, scale)

    k_lstm = 1.0 / math.sqrt(H)
    k_fc = 1.0 / math.sqrt(2 * H)
    params = {
        # forward-direction LSTM params (PyTorch shapes: weight_ih (4H,D), weight_hh (4H,H))
        "wih_f": u(keys[0], (4 * H, D), k_lstm),
        "whh_f": u(keys[1], (4 * H, H), k_lstm),
        "bih_f": u(keys[2], (4 * H,), k_lstm),
        "bhh_f": u(keys[3], (4 * H,), k_lstm),
        # reverse-direction LSTM params
        "wih_b": u(keys[4], (4 * H, D), k_lstm),
        "whh_b": u(keys[5], (4 * H, H), k_lstm),
        "bih_b": u(keys[6], (4 * H,), k_lstm),
        "bhh_b": u(keys[7], (4 * H,), k_lstm),
        # fc2: Linear(2H -> 2H), fc1: Linear(2H -> 1)
        "w2": u(keys[8], (2 * H, 2 * H), k_fc),
        "b2": u(keys[9], (2 * H,), k_fc),
        "w1": u(keys[10], (1, 2 * H), k_fc),
        "b1": u(keys[11], (1,), k_fc),
    }

    x = jax.random.normal(keys[12], (B, T, D), jnp.float32)

    out = jax.block_until_ready(dsn_forward(x, params))
    ref = dsn_ref(x, params)

    assert out.shape == (B, T, 1)
    np.testing.assert_allclose(np.asarray(out), np.asarray(ref), rtol=1e-3, atol=1e-4)
    print("KERNEL_OK")
</pallas_src>

<mosaic_0001>
module attributes {stable_mosaic.version = 11 : i64} {
  func.func @dsn_kernel(%arg0: memref<16x38xf32, #tpu.memory_space<vmem>>, %arg1: memref<38x256xf32, #tpu.memory_space<vmem>>, %arg2: memref<64x256xf32, #tpu.memory_space<vmem>>, %arg3: memref<1x256xf32, #tpu.memory_space<vmem>>, %arg4: memref<1x64xf32, #tpu.memory_space<vmem>>, %arg5: memref<1x1xf32, #tpu.memory_space<vmem>>, %arg6: memref<2x8xf32, #tpu.memory_space<vmem>>, %arg7: memref<8x2x256xf32, #tpu.memory_space<vmem>>) attributes {dimension_semantics = [], scalar_prefetch = 0 : i64, scratch_operands = 1 : i64, tpu.core_type = #tpu.core_type<tc>} {
    %c0 = arith.constant 0 : index
    %c0_0 = arith.constant 0 : index
    %0 = vector.load %arg0[%c0, %c0_0] : memref<16x38xf32, #tpu.memory_space<vmem>>, vector<16x38xf32>
    %c0_1 = arith.constant 0 : index
    %c0_2 = arith.constant 0 : index
    %1 = vector.load %arg1[%c0_1, %c0_2] : memref<38x256xf32, #tpu.memory_space<vmem>>, vector<38x256xf32>
    %cst = arith.constant dense<0.000000e+00> : vector<16x256xf32>
    %2 = tpu.matmul %0, %1, %cst {dimension_numbers = #tpu.dot_dimension_numbers<[1], [0], [0], [1], [0, 0, 1, 1], [], []>} : vector<16x38xf32>, vector<38x256xf32>, vector<16x256xf32> -> vector<16x256xf32>
    %c0_3 = arith.constant 0 : index
    %c0_4 = arith.constant 0 : index
    %3 = vector.load %arg3[%c0_3, %c0_4] : memref<1x256xf32, #tpu.memory_space<vmem>>, vector<1x256xf32>
    %4 = vector.broadcast %3 : vector<1x256xf32> to vector<16x256xf32>
    %5 = arith.addf %2, %4 : vector<16x256xf32>
    %6 = vector.extract_strided_slice %5 {offsets = [0, 0], sizes = [2, 256], strides = [1, 1]} : vector<16x256xf32> to vector<2x256xf32>
    %c0_5 = arith.constant 0 : index
    %c0_6 = arith.constant 0 : index
    %c0_7 = arith.constant 0 : index
    %7 = vector.load %arg7[%c0_5, %c0_6, %c0_7] : memref<8x2x256xf32, #tpu.memory_space<vmem>>, vector<1x2x256xf32>
    %8 = vector.shape_cast %7 : vector<1x2x256xf32> to vector<2x256xf32>
    %9 = vector.shape_cast %6 : vector<2x256xf32> to vector<1x2x256xf32>
    tpu.vector_store %arg7[%c0_5, %c0_6, %c0_7], %9 {strides = array<i32>} : memref<8x2x256xf32, #tpu.memory_space<vmem>>, vector<1x2x256xf32>,
    %10 = vector.extract_strided_slice %5 {offsets = [2, 0], sizes = [2, 256], strides = [1, 1]} : vector<16x256xf32> to vector<2x256xf32>
    %c1 = arith.constant 1 : index
    %c0_8 = arith.constant 0 : index
    %c0_9 = arith.constant 0 : index
    %11 = vector.load %arg7[%c1, %c0_8, %c0_9] : memref<8x2x256xf32, #tpu.memory_space<vmem>>, vector<1x2x256xf32>
    %12 = vector.shape_cast %11 : vector<1x2x256xf32> to vector<2x256xf32>
    %13 = vector.shape_cast %10 : vector<2x256xf32> to vector<1x2x256xf32>
    tpu.vector_store %arg7[%c1, %c0_8, %c0_9], %13 {strides = array<i32>} : memref<8x2x256xf32, #tpu.memory_space<vmem>>, vector<1x2x256xf32>,
    %14 = vector.extract_strided_slice %5 {offsets = [4, 0], sizes = [2, 256], strides = [1, 1]} : vector<16x256xf32> to vector<2x256xf32>
    %c2 = arith.constant 2 : index
    %c0_10 = arith.constant 0 : index
    %c0_11 = arith.constant 0 : index
    %15 = vector.load %arg7[%c2, %c0_10, %c0_11] : memref<8x2x256xf32, #tpu.memory_space<vmem>>, vector<1x2x256xf32>
    %16 = vector.shape_cast %15 : vector<1x2x256xf32> to vector<2x256xf32>
    %17 = vector.shape_cast %14 : vector<2x256xf32> to vector<1x2x256xf32>
    tpu.vector_store %arg7[%c2, %c0_10, %c0_11], %17 {strides = array<i32>} : memref<8x2x256xf32, #tpu.memory_space<vmem>>, vector<1x2x256xf32>,
    %18 = vector.extract_strided_slice %5 {offsets = [6, 0], sizes = [2, 256], strides = [1, 1]} : vector<16x256xf32> to vector<2x256xf32>
    %c3 = arith.constant 3 : index
    %c0_12 = arith.constant 0 : index
    %c0_13 = arith.constant 0 : index
    %19 = vector.load %arg7[%c3, %c0_12, %c0_13] : memref<8x2x256xf32, #tpu.memory_space<vmem>>, vector<1x2x256xf32>
    %20 = vector.shape_cast %19 : vector<1x2x256xf32> to vector<2x256xf32>
    %21 = vector.shape_cast %18 : vector<2x256xf32> to vector<1x2x256xf32>
    tpu.vector_store %arg7[%c3, %c0_12, %c0_13], %21 {strides = array<i32>} : memref<8x2x256xf32, #tpu.memory_space<vmem>>, vector<1x2x256xf32>,
    %22 = vector.extract_strided_slice %5 {offsets = [8, 0], sizes = [2, 256], strides = [1, 1]} : vector<16x256xf32> to vector<2x256xf32>
    %c4 = arith.constant 4 : index
    %c0_14 = arith.constant 0 : index
    %c0_15 = arith.constant 0 : index
    %23 = vector.load %arg7[%c4, %c0_14, %c0_15] : memref<8x2x256xf32, #tpu.memory_space<vmem>>, vector<1x2x256xf32>
    %24 = vector.shape_cast %23 : vector<1x2x256xf32> to vector<2x256xf32>
    %25 = vector.shape_cast %22 : vector<2x256xf32> to vector<1x2x256xf32>
    tpu.vector_store %arg7[%c4, %c0_14, %c0_15], %25 {strides = array<i32>} : memref<8x2x256xf32, #tpu.memory_space<vmem>>, vector<1x2x256xf32>,
    %26 = vector.extract_strided_slice %5 {offsets = [10, 0], sizes = [2, 256], strides = [1, 1]} : vector<16x256xf32> to vector<2x256xf32>
    %c5 = arith.constant 5 : index
    %c0_16 = arith.constant 0 : index
    %c0_17 = arith.constant 0 : index
    %27 = vector.load %arg7[%c5, %c0_16, %c0_17] : memref<8x2x256xf32, #tpu.memory_space<vmem>>, vector<1x2x256xf32>
    %28 = vector.shape_cast %27 : vector<1x2x256xf32> to vector<2x256xf32>
    %29 = vector.shape_cast %26 : vector<2x256xf32> to vector<1x2x256xf32>
    tpu.vector_store %arg7[%c5, %c0_16, %c0_17], %29 {strides = array<i32>} : memref<8x2x256xf32, #tpu.memory_space<vmem>>, vector<1x2x256xf32>,
    %30 = vector.extract_strided_slice %5 {offsets = [12, 0], sizes = [2, 256], strides = [1, 1]} : vector<16x256xf32> to vector<2x256xf32>
    %c6 = arith.constant 6 : index
    %c0_18 = arith.constant 0 : index
    %c0_19 = arith.constant 0 : index
    %31 = vector.load %arg7[%c6, %c0_18, %c0_19] : memref<8x2x256xf32, #tpu.memory_space<vmem>>, vector<1x2x256xf32>
    %32 = vector.shape_cast %31 : vector<1x2x256xf32> to vector<2x256xf32>
    %33 = vector.shape_cast %30 : vector<2x256xf32> to vector<1x2x256xf32>
    tpu.vector_store %arg7[%c6, %c0_18, %c0_19], %33 {strides = array<i32>} : memref<8x2x256xf32, #tpu.memory_space<vmem>>, vector<1x2x256xf32>,
    %34 = vector.extract_strided_slice %5 {offsets = [14, 0], sizes = [2, 256], strides = [1, 1]} : vector<16x256xf32> to vector<2x256xf32>
    %c7 = arith.constant 7 : index
    %c0_20 = arith.constant 0 : index
    %c0_21 = arith.constant 0 : index
    %35 = vector.load %arg7[%c7, %c0_20, %c0_21] : memref<8x2x256xf32, #tpu.memory_space<vmem>>, vector<1x2x256xf32>
    %36 = vector.shape_cast %35 : vector<1x2x256xf32> to vector<2x256xf32>
    %37 = vector.shape_cast %34 : vector<2x256xf32> to vector<1x2x256xf32>
    tpu.vector_store %arg7[%c7, %c0_20, %c0_21], %37 {strides = array<i32>} : memref<8x2x256xf32, #tpu.memory_space<vmem>>, vector<1x2x256xf32>,
    %c0_22 = arith.constant 0 : index
    %c0_23 = arith.constant 0 : index
    %38 = vector.load %arg2[%c0_22, %c0_23] : memref<64x256xf32, #tpu.memory_space<vmem>>, vector<64x256xf32>
    %c0_24 = arith.constant 0 : index
    %c0_25 = arith.constant 0 : index
    %39 = vector.load %arg4[%c0_24, %c0_25] : memref<1x64xf32, #tpu.memory_space<vmem>>, vector<1x64xf32>
    %40 = vector.shape_cast %39 : vector<1x64xf32> to vector<1x64xf32>
    %41 = vector.broadcast %40 : vector<1x64xf32> to vector<2x64xf32>
    %c0_26 = arith.constant 0 : index
    %c0_27 = arith.constant 0 : index
    %42 = vector.load %arg5[%c0_26, %c0_27] : memref<1x1xf32, #tpu.memory_space<vmem>>, vector<1x1xf32>
    %cst_28 = arith.constant 0.000000e+00 : f32
    %43 = vector.broadcast %cst_28 : f32 to vector<2x64xf32>
    %cst_29 = arith.constant 0.000000e+00 : f32
    %44 = vector.broadcast %cst_29 : f32 to vector<2x64xf32>
    %c0_30 = arith.constant 0 : index
    %c0_31 = arith.constant 0 : index
    %c0_32 = arith.constant 0 : index
    %45 = vector.load %arg7[%c0_30, %c0_31, %c0_32] : memref<8x2x256xf32, #tpu.memory_space<vmem>>, vector<1x2x256xf32>
    %46 = vector.shape_cast %45 : vector<1x2x256xf32> to vector<2x256xf32>
    %cst_33 = arith.constant dense<0.000000e+00> : vector<2x256xf32>
    %47 = tpu.matmul %43, %38, %cst_33 {dimension_numbers = #tpu.dot_dimension_numbers<[1], [0], [0], [1], [0, 0, 1, 1], [], []>} : vector<2x64xf32>, vector<64x256xf32>, vector<2x256xf32> -> vector<2x256xf32>
    %48 = arith.addf %46, %47 : vector<2x256xf32>
    %49 = vector.extract_strided_slice %48 {offsets = [0, 0], sizes = [2, 192], strides = [1, 1]} : vector<2x256xf32> to vector<2x192xf32>
    %50 = arith.negf %49 : vector<2x192xf32>
    %51 = math.exp %50 : vector<2x192xf32>
    %cst_34 = arith.constant 1.000000e+00 : f32
    %52 = vector.broadcast %cst_34 : f32 to vector<2x192xf32>
    %53 = arith.addf %52, %51 : vector<2x192xf32>
    %54 = arith.divf %52, %53 : vector<2x192xf32>
    %55 = vector.extract_strided_slice %48 {offsets = [0, 192], sizes = [2, 64], strides = [1, 1]} : vector<2x256xf32> to vector<2x64xf32>
    %56 = math.tanh %55 : vector<2x64xf32>
    %57 = vector.extract_strided_slice %54 {offsets = [0, 64], sizes = [2, 64], strides = [1, 1]} : vector<2x192xf32> to vector<2x64xf32>
    %58 = arith.mulf %57, %44 : vector<2x64xf32>
    %59 = vector.extract_strided_slice %54 {offsets = [0, 0], sizes = [2, 64], strides = [1, 1]} : vector<2x192xf32> to vector<2x64xf32>
    %60 = arith.mulf %59, %56 : vector<2x64xf32>
    %61 = arith.addf %58, %60 : vector<2x64xf32>
    %62 = vector.extract_strided_slice %54 {offsets = [0, 128], sizes = [2, 64], strides = [1, 1]} : vector<2x192xf32> to vector<2x64xf32>
    %63 = math.tanh %61 : vector<2x64xf32>
    %64 = arith.mulf %62, %63 : vector<2x64xf32>
    %65 = arith.mulf %64, %41 : vector<2x64xf32>
    %66 = vector.extract_strided_slice %65 {offsets = [0, 0], sizes = [2, 32], strides = [1, 1]} : vector<2x64xf32> to vector<2x32xf32>
    %cst_35 = arith.constant dense<0.000000e+00> : vector<2xf32>
    %67 = vector.multi_reduction <add>, %66, %cst_35 [1] : vector<2x32xf32> to vector<2xf32>
    %68 = vector.shape_cast %67 : vector<2xf32> to vector<2x1xf32>
    %69 = vector.extract_strided_slice %65 {offsets = [0, 32], sizes = [2, 32], strides = [1, 1]} : vector<2x64xf32> to vector<2x32xf32>
    %cst_36 = arith.constant dense<0.000000e+00> : vector<2xf32>
    %70 = vector.multi_reduction <add>, %69, %cst_36 [1] : vector<2x32xf32> to vector<2xf32>
    %71 = vector.shape_cast %70 : vector<2xf32> to vector<2x1xf32>
    %c1_37 = arith.constant 1 : index
    %c0_38 = arith.constant 0 : index
    %c0_39 = arith.constant 0 : index
    %72 = vector.load %arg7[%c1_37, %c0_38, %c0_39] : memref<8x2x256xf32, #tpu.memory_space<vmem>>, vector<1x2x256xf32>
    %73 = vector.shape_cast %72 : vector<1x2x256xf32> to vector<2x256xf32>
    %cst_40 = arith.constant dense<0.000000e+00> : vector<2x256xf32>
    %74 = tpu.matmul %64, %38, %cst_40 {dimension_numbers = #tpu.dot_dimension_numbers<[1], [0], [0], [1], [0, 0, 1, 1], [], []>} : vector<2x64xf32>, vector<64x256xf32>, vector<2x256xf32> -> vector<2x256xf32>
    %75 = arith.addf %73, %74 : vector<2x256xf32>
    %76 = vector.extract_strided_slice %75 {offsets = [0, 0], sizes = [2, 192], strides = [1, 1]} : vector<2x256xf32> to vector<2x192xf32>
    %77 = arith.negf %76 : vector<2x192xf32>
    %78 = math.exp %77 : vector<2x192xf32>
    %cst_41 = arith.constant 1.000000e+00 : f32
    %79 = vector.broadcast %cst_41 : f32 to vector<2x192xf32>
    %80 = arith.addf %79, %78 : vector<2x192xf32>
    %81 = arith.divf %79, %80 : vector<2x192xf32>
    %82 = vector.extract_strided_slice %75 {offsets = [0, 192], sizes = [2, 64], strides = [1, 1]} : vector<2x256xf32> to vector<2x64xf32>
    %83 = math.tanh %82 : vector<2x64xf32>
    %84 = vector.extract_strided_slice %81 {offsets = [0, 64], sizes = [2, 64], strides = [1, 1]} : vector<2x192xf32> to vector<2x64xf32>
    %85 = arith.mulf %84, %61 : vector<2x64xf32>
    %86 = vector.extract_strided_slice %81 {offsets = [0, 0], sizes = [2, 64], strides = [1, 1]} : vector<2x192xf32> to vector<2x64xf32>
    %87 = arith.mulf %86, %83 : vector<2x64xf32>
    %88 = arith.addf %85, %87 : vector<2x64xf32>
    %89 = vector.extract_strided_slice %81 {offsets = [0, 128], sizes = [2, 64], strides = [1, 1]} : vector<2x192xf32> to vector<2x64xf32>
    %90 = math.tanh %88 : vector<2x64xf32>
    %91 = arith.mulf %89, %90 : vector<2x64xf32>
    %92 = arith.mulf %91, %41 : vector<2x64xf32>
    %93 = vector.extract_strided_slice %92 {offsets = [0, 0], sizes = [2, 32], strides = [1, 1]} : vector<2x64xf32> to vector<2x32xf32>
    %cst_42 = arith.constant dense<0.000000e+00> : vector<2xf32>
    %94 = vector.multi_reduction <add>, %93, %cst_42 [1] : vector<2x32xf32> to vector<2xf32>
    %95 = vector.shape_cast %94 : vector<2xf32> to vector<2x1xf32>
    %96 = vector.extract_strided_slice %92 {offsets = [0, 32], sizes = [2, 32], strides = [1, 1]} : vector<2x64xf32> to vector<2x32xf32>
    %cst_43 = arith.constant dense<0.000000e+00> : vector<2xf32>
    %97 = vector.multi_reduction <add>, %96, %cst_43 [1] : vector<2x32xf32> to vector<2xf32>
    %98 = vector.shape_cast %97 : vector<2xf32> to vector<2x1xf32>
    %c2_44 = arith.constant 2 : index
    %c0_45 = arith.constant 0 : index
    %c0_46 = arith.constant 0 : index
    %99 = vector.load %arg7[%c2_44, %c0_45, %c0_46] : memref<8x2x256xf32, #tpu.memory_space<vmem>>, vector<1x2x256xf32>
    %100 = vector.shape_cast %99 : vector<1x2x256xf32> to vector<2x256xf32>
    %cst_47 = arith.constant dense<0.000000e+00> : vector<2x256xf32>
    %101 = tpu.matmul %91, %38, %cst_47 {dimension_numbers = #tpu.dot_dimension_numbers<[1], [0], [0], [1], [0, 0, 1, 1], [], []>} : vector<2x64xf32>, vector<64x256xf32>, vector<2x256xf32> -> vector<2x256xf32>
    %102 = arith.addf %100, %101 : vector<2x256xf32>
    %103 = vector.extract_strided_slice %102 {offsets = [0, 0], sizes = [2, 192], strides = [1, 1]} : vector<2x256xf32> to vector<2x192xf32>
    %104 = arith.negf %103 : vector<2x192xf32>
    %105 = math.exp %104 : vector<2x192xf32>
    %cst_48 = arith.constant 1.000000e+00 : f32
    %106 = vector.broadcast %cst_48 : f32 to vector<2x192xf32>
    %107 = arith.addf %106, %105 : vector<2x192xf32>
    %108 = arith.divf %106, %107 : vector<2x192xf32>
    %109 = vector.extract_strided_slice %102 {offsets = [0, 192], sizes = [2, 64], strides = [1, 1]} : vector<2x256xf32> to vector<2x64xf32>
    %110 = math.tanh %109 : vector<2x64xf32>
    %111 = vector.extract_strided_slice %108 {offsets = [0, 64], sizes = [2, 64], strides = [1, 1]} : vector<2x192xf32> to vector<2x64xf32>
    %112 = arith.mulf %111, %88 : vector<2x64xf32>
    %113 = vector.extract_strided_slice %108 {offsets = [0, 0], sizes = [2, 64], strides = [1, 1]} : vector<2x192xf32> to vector<2x64xf32>
    %114 = arith.mulf %113, %110 : vector<2x64xf32>
    %115 = arith.addf %112, %114 : vector<2x64xf32>
    %116 = vector.extract_strided_slice %108 {offsets = [0, 128], sizes = [2, 64], strides = [1, 1]} : vector<2x192xf32> to vector<2x64xf32>
    %117 = math.tanh %115 : vector<2x64xf32>
    %118 = arith.mulf %116, %117 : vector<2x64xf32>
    %119 = arith.mulf %118, %41 : vector<2x64xf32>
    %120 = vector.extract_strided_slice %119 {offsets = [0, 0], sizes = [2, 32], strides = [1, 1]} : vector<2x64xf32> to vector<2x32xf32>
    %cst_49 = arith.constant dense<0.000000e+00> : vector<2xf32>
    %121 = vector.multi_reduction <add>, %120, %cst_49 [1] : vector<2x32xf32> to vector<2xf32>
    %122 = vector.shape_cast %121 : vector<2xf32> to vector<2x1xf32>
    %123 = vector.extract_strided_slice %119 {offsets = [0, 32], sizes = [2, 32], strides = [1, 1]} : vector<2x64xf32> to vector<2x32xf32>
    %cst_50 = arith.constant dense<0.000000e+00> : vector<2xf32>
    %124 = vector.multi_reduction <add>, %123, %cst_50 [1] : vector<2x32xf32> to vector<2xf32>
    %125 = vector.shape_cast %124 : vector<2xf32> to vector<2x1xf32>
    %c3_51 = arith.constant 3 : index
    %c0_52 = arith.constant 0 : index
    %c0_53 = arith.constant 0 : index
    %126 = vector.load %arg7[%c3_51, %c0_52, %c0_53] : memref<8x2x256xf32, #tpu.memory_space<vmem>>, vector<1x2x256xf32>
    %127 = vector.shape_cast %126 : vector<1x2x256xf32> to vector<2x256xf32>
    %cst_54 = arith.constant dense<0.000000e+00> : vector<2x256xf32>
    %128 = tpu.matmul %118, %38, %cst_54 {dimension_numbers = #tpu.dot_dimension_numbers<[1], [0], [0], [1], [0, 0, 1, 1], [], []>} : vector<2x64xf32>, vector<64x256xf32>, vector<2x256xf32> -> vector<2x256xf32>
    %129 = arith.addf %127, %128 : vector<2x256xf32>
    %130 = vector.extract_strided_slice %129 {offsets = [0, 0], sizes = [2, 192], strides = [1, 1]} : vector<2x256xf32> to vector<2x192xf32>
    %131 = arith.negf %130 : vector<2x192xf32>
    %132 = math.exp %131 : vector<2x192xf32>
    %cst_55 = arith.constant 1.000000e+00 : f32
    %133 = vector.broadcast %cst_55 : f32 to vector<2x192xf32>
    %134 = arith.addf %133, %132 : vector<2x192xf32>
    %135 = arith.divf %133, %134 : vector<2x192xf32>
    %136 = vector.extract_strided_slice %129 {offsets = [0, 192], sizes = [2, 64], strides = [1, 1]} : vector<2x256xf32> to vector<2x64xf32>
    %137 = math.tanh %136 : vector<2x64xf32>
    %138 = vector.extract_strided_slice %135 {offsets = [0, 64], sizes = [2, 64], strides = [1, 1]} : vector<2x192xf32> to vector<2x64xf32>
    %139 = arith.mulf %138, %115 : vector<2x64xf32>
    %140 = vector.extract_strided_slice %135 {offsets = [0, 0], sizes = [2, 64], strides = [1, 1]} : vector<2x192xf32> to vector<2x64xf32>
    %141 = arith.mulf %140, %137 : vector<2x64xf32>
    %142 = arith.addf %139, %141 : vector<2x64xf32>
    %143 = vector.extract_strided_slice %135 {offsets = [0, 128], sizes = [2, 64], strides = [1, 1]} : vector<2x192xf32> to vector<2x64xf32>
    %144 = math.tanh %142 : vector<2x64xf32>
    %145 = arith.mulf %143, %144 : vector<2x64xf32>
    %146 = arith.mulf %145, %41 : vector<2x64xf32>
    %147 = vector.extract_strided_slice %146 {offsets = [0, 0], sizes = [2, 32], strides = [1, 1]} : vector<2x64xf32> to vector<2x32xf32>
    %cst_56 = arith.constant dense<0.000000e+00> : vector<2xf32>
    %148 = vector.multi_reduction <add>, %147, %cst_56 [1] : vector<2x32xf32> to vector<2xf32>
    %149 = vector.shape_cast %148 : vector<2xf32> to vector<2x1xf32>
    %150 = vector.extract_strided_slice %146 {offsets = [0, 32], sizes = [2, 32], strides = [1, 1]} : vector<2x64xf32> to vector<2x32xf32>
    %cst_57 = arith.constant dense<0.000000e+00> : vector<2xf32>
    %151 = vector.multi_reduction <add>, %150, %cst_57 [1] : vector<2x32xf32> to vector<2xf32>
    %152 = vector.shape_cast %151 : vector<2xf32> to vector<2x1xf32>
    %c4_58 = arith.constant 4 : index
    %c0_59 = arith.constant 0 : index
    %c0_60 = arith.constant 0 : index
    %153 = vector.load %arg7[%c4_58, %c0_59, %c0_60] : memref<8x2x256xf32, #tpu.memory_space<vmem>>, vector<1x2x256xf32>
    %154 = vector.shape_cast %153 : vector<1x2x256xf32> to vector<2x256xf32>
    %cst_61 = arith.constant dense<0.000000e+00> : vector<2x256xf32>
    %155 = tpu.matmul %145, %38, %cst_61 {dimension_numbers = #tpu.dot_dimension_numbers<[1], [0], [0], [1], [0, 0, 1, 1], [], []>} : vector<2x64xf32>, vector<64x256xf32>, vector<2x256xf32> -> vector<2x256xf32>
    %156 = arith.addf %154, %155 : vector<2x256xf32>
    %157 = vector.extract_strided_slice %156 {offsets = [0, 0], sizes = [2, 192], strides = [1, 1]} : vector<2x256xf32> to vector<2x192xf32>
    %158 = arith.negf %157 : vector<2x192xf32>
    %159 = math.exp %158 : vector<2x192xf32>
    %cst_62 = arith.constant 1.000000e+00 : f32
    %160 = vector.broadcast %cst_62 : f32 to vector<2x192xf32>
    %161 = arith.addf %160, %159 : vector<2x192xf32>
    %162 = arith.divf %160, %161 : vector<2x192xf32>
    %163 = vector.extract_strided_slice %156 {offsets = [0, 192], sizes = [2, 64], strides = [1, 1]} : vector<2x256xf32> to vector<2x64xf32>
    %164 = math.tanh %163 : vector<2x64xf32>
    %165 = vector.extract_strided_slice %162 {offsets = [0, 64], sizes = [2, 64], strides = [1, 1]} : vector<2x192xf32> to vector<2x64xf32>
    %166 = arith.mulf %165, %142 : vector<2x64xf32>
    %167 = vector.extract_strided_slice %162 {offsets = [0, 0], sizes = [2, 64], strides = [1, 1]} : vector<2x192xf32> to vector<2x64xf32>
    %168 = arith.mulf %167, %164 : vector<2x64xf32>
    %169 = arith.addf %166, %168 : vector<2x64xf32>
    %170 = vector.extract_strided_slice %162 {offsets = [0, 128], sizes = [2, 64], strides = [1, 1]} : vector<2x192xf32> to vector<2x64xf32>
    %171 = math.tanh %169 : vector<2x64xf32>
    %172 = arith.mulf %170, %171 : vector<2x64xf32>
    %173 = arith.mulf %172, %41 : vector<2x64xf32>
    %174 = vector.extract_strided_slice %173 {offsets = [0, 0], sizes = [2, 32], strides = [1, 1]} : vector<2x64xf32> to vector<2x32xf32>
    %cst_63 = arith.constant dense<0.000000e+00> : vector<2xf32>
    %175 = vector.multi_reduction <add>, %174, %cst_63 [1] : vector<2x32xf32> to vector<2xf32>
    %176 = vector.shape_cast %175 : vector<2xf32> to vector<2x1xf32>
    %177 = vector.extract_strided_slice %173 {offsets = [0, 32], sizes = [2, 32], strides = [1, 1]} : vector<2x64xf32> to vector<2x32xf32>
    %cst_64 = arith.constant dense<0.000000e+00> : vector<2xf32>
    %178 = vector.multi_reduction <add>, %177, %cst_64 [1] : vector<2x32xf32> to vector<2xf32>
    %179 = vector.shape_cast %178 : vector<2xf32> to vector<2x1xf32>
    %c5_65 = arith.constant 5 : index
    %c0_66 = arith.constant 0 : index
    %c0_67 = arith.constant 0 : index
    %180 = vector.load %arg7[%c5_65, %c0_66, %c0_67] : memref<8x2x256xf32, #tpu.memory_space<vmem>>, vector<1x2x256xf32>
    %181 = vector.shape_cast %180 : vector<1x2x256xf32> to vector<2x256xf32>
    %cst_68 = arith.constant dense<0.000000e+00> : vector<2x256xf32>
    %182 = tpu.matmul %172, %38, %cst_68 {dimension_numbers = #tpu.dot_dimension_numbers<[1], [0], [0], [1], [0, 0, 1, 1], [], []>} : vector<2x64xf32>, vector<64x256xf32>, vector<2x256xf32> -> vector<2x256xf32>
    %183 = arith.addf %181, %182 : vector<2x256xf32>
    %184 = vector.extract_strided_slice %183 {offsets = [0, 0], sizes = [2, 192], strides = [1, 1]} : vector<2x256xf32> to vector<2x192xf32>
    %185 = arith.negf %184 : vector<2x192xf32>
    %186 = math.exp %185 : vector<2x192xf32>
    %cst_69 = arith.constant 1.000000e+00 : f32
    %187 = vector.broadcast %cst_69 : f32 to vector<2x192xf32>
    %188 = arith.addf %187, %186 : vector<2x192xf32>
    %189 = arith.divf %187, %188 : vector<2x192xf32>
    %190 = vector.extract_strided_slice %183 {offsets = [0, 192], sizes = [2, 64], strides = [1, 1]} : vector<2x256xf32> to vector<2x64xf32>
    %191 = math.tanh %190 : vector<2x64xf32>
    %192 = vector.extract_strided_slice %189 {offsets = [0, 64], sizes = [2, 64], strides = [1, 1]} : vector<2x192xf32> to vector<2x64xf32>
    %193 = arith.mulf %192, %169 : vector<2x64xf32>
    %194 = vector.extract_strided_slice %189 {offsets = [0, 0], sizes = [2, 64], strides = [1, 1]} : vector<2x192xf32> to vector<2x64xf32>
    %195 = arith.mulf %194, %191 : vector<2x64xf32>
    %196 = arith.addf %193, %195 : vector<2x64xf32>
    %197 = vector.extract_strided_slice %189 {offsets = [0, 128], sizes = [2, 64], strides = [1, 1]} : vector<2x192xf32> to vector<2x64xf32>
    %198 = math.tanh %196 : vector<2x64xf32>
    %199 = arith.mulf %197, %198 : vector<2x64xf32>
    %200 = arith.mulf %199, %41 : vector<2x64xf32>
    %201 = vector.extract_strided_slice %200 {offsets = [0, 0], sizes = [2, 32], strides = [1, 1]} : vector<2x64xf32> to vector<2x32xf32>
    %cst_70 = arith.constant dense<0.000000e+00> : vector<2xf32>
    %202 = vector.multi_reduction <add>, %201, %cst_70 [1] : vector<2x32xf32> to vector<2xf32>
    %203 = vector.shape_cast %202 : vector<2xf32> to vector<2x1xf32>
    %204 = vector.extract_strided_slice %200 {offsets = [0, 32], sizes = [2, 32], strides = [1, 1]} : vector<2x64xf32> to vector<2x32xf32>
    %cst_71 = arith.constant dense<0.000000e+00> : vector<2xf32>
    %205 = vector.multi_reduction <add>, %204, %cst_71 [1] : vector<2x32xf32> to vector<2xf32>
    %206 = vector.shape_cast %205 : vector<2xf32> to vector<2x1xf32>
    %c6_72 = arith.constant 6 : index
    %c0_73 = arith.constant 0 : index
    %c0_74 = arith.constant 0 : index
    %207 = vector.load %arg7[%c6_72, %c0_73, %c0_74] : memref<8x2x256xf32, #tpu.memory_space<vmem>>, vector<1x2x256xf32>
    %208 = vector.shape_cast %207 : vector<1x2x256xf32> to vector<2x256xf32>
    %cst_75 = arith.constant dense<0.000000e+00> : vector<2x256xf32>
    %209 = tpu.matmul %199, %38, %cst_75 {dimension_numbers = #tpu.dot_dimension_numbers<[1], [0], [0], [1], [0, 0, 1, 1], [], []>} : vector<2x64xf32>, vector<64x256xf32>, vector<2x256xf32> -> vector<2x256xf32>
    %210 = arith.addf %208, %209 : vector<2x256xf32>
    %211 = vector.extract_strided_slice %210 {offsets = [0, 0], sizes = [2, 192], strides = [1, 1]} : vector<2x256xf32> to vector<2x192xf32>
    %212 = arith.negf %211 : vector<2x192xf32>
    %213 = math.exp %212 : vector<2x192xf32>
    %cst_76 = arith.constant 1.000000e+00 : f32
    %214 = vector.broadcast %cst_76 : f32 to vector<2x192xf32>
    %215 = arith.addf %214, %213 : vector<2x192xf32>
    %216 = arith.divf %214, %215 : vector<2x192xf32>
    %217 = vector.extract_strided_slice %210 {offsets = [0, 192], sizes = [2, 64], strides = [1, 1]} : vector<2x256xf32> to vector<2x64xf32>
    %218 = math.tanh %217 : vector<2x64xf32>
    %219 = vector.extract_strided_slice %216 {offsets = [0, 64], sizes = [2, 64], strides = [1, 1]} : vector<2x192xf32> to vector<2x64xf32>
    %220 = arith.mulf %219, %196 : vector<2x64xf32>
    %221 = vector.extract_strided_slice %216 {offsets = [0, 0], sizes = [2, 64], strides = [1, 1]} : vector<2x192xf32> to vector<2x64xf32>
    %222 = arith.mulf %221, %218 : vector<2x64xf32>
    %223 = arith.addf %220, %222 : vector<2x64xf32>
    %224 = vector.extract_strided_slice %216 {offsets = [0, 128], sizes = [2, 64], strides = [1, 1]} : vector<2x192xf32> to vector<2x64xf32>
    %225 = math.tanh %223 : vector<2x64xf32>
    %226 = arith.mulf %224, %225 : vector<2x64xf32>
    %227 = arith.mulf %226, %41 : vector<2x64xf32>
    %228 = vector.extract_strided_slice %227 {offsets = [0, 0], sizes = [2, 32], strides = [1, 1]} : vector<2x64xf32> to vector<2x32xf32>
    %cst_77 = arith.constant dense<0.000000e+00> : vector<2xf32>
    %229 = vector.multi_reduction <add>, %228, %cst_77 [1] : vector<2x32xf32> to vector<2xf32>
    %230 = vector.shape_cast %229 : vector<2xf32> to vector<2x1xf32>
    %231 = vector.extract_strided_slice %227 {offsets = [0, 32], sizes = [2, 32], strides = [1, 1]} : vector<2x64xf32> to vector<2x32xf32>
    %cst_78 = arith.constant dense<0.000000e+00> : vector<2xf32>
    %232 = vector.multi_reduction <add>, %231, %cst_78 [1] : vector<2x32xf32> to vector<2xf32>
    %233 = vector.shape_cast %232 : vector<2xf32> to vector<2x1xf32>
    %c7_79 = arith.constant 7 : index
    %c0_80 = arith.constant 0 : index
    %c0_81 = arith.constant 0 : index
    %234 = vector.load %arg7[%c7_79, %c0_80, %c0_81] : memref<8x2x256xf32, #tpu.memory_space<vmem>>, vector<1x2x256xf32>
    %235 = vector.shape_cast %234 : vector<1x2x256xf32> to vector<2x256xf32>
    %cst_82 = arith.constant dense<0.000000e+00> : vector<2x256xf32>
    %236 = tpu.matmul %226, %38, %cst_82 {dimension_numbers = #tpu.dot_dimension_numbers<[1], [0], [0], [1], [0, 0, 1, 1], [], []>} : vector<2x64xf32>, vector<64x256xf32>, vector<2x256xf32> -> vector<2x256xf32>
    %237 = arith.addf %235, %236 : vector<2x256xf32>
    %238 = vector.extract_strided_slice %237 {offsets = [0, 0], sizes = [2, 192], strides = [1, 1]} : vector<2x256xf32> to vector<2x192xf32>
    %239 = arith.negf %238 : vector<2x192xf32>
    %240 = math.exp %239 : vector<2x192xf32>
    %cst_83 = arith.constant 1.000000e+00 : f32
    %241 = vector.broadcast %cst_83 : f32 to vector<2x192xf32>
    %242 = arith.addf %241, %240 : vector<2x192xf32>
    %243 = arith.divf %241, %242 : vector<2x192xf32>
    %244 = vector.extract_strided_slice %237 {offsets = [0, 192], sizes = [2, 64], strides = [1, 1]} : vector<2x256xf32> to vector<2x64xf32>
    %245 = math.tanh %244 : vector<2x64xf32>
    %246 = vector.extract_strided_slice %243 {offsets = [0, 64], sizes = [2, 64], strides = [1, 1]} : vector<2x192xf32> to vector<2x64xf32>
    %247 = arith.mulf %246, %223 : vector<2x64xf32>
    %248 = vector.extract_strided_slice %243 {offsets = [0, 0], sizes = [2, 64], strides = [1, 1]} : vector<2x192xf32> to vector<2x64xf32>
    %249 = arith.mulf %248, %245 : vector<2x64xf32>
    %250 = arith.addf %247, %249 : vector<2x64xf32>
    %251 = vector.extract_strided_slice %243 {offsets = [0, 128], sizes = [2, 64], strides = [1, 1]} : vector<2x192xf32> to vector<2x64xf32>
    %252 = math.tanh %250 : vector<2x64xf32>
    %253 = arith.mulf %251, %252 : vector<2x64xf32>
    %254 = arith.mulf %253, %41 : vector<2x64xf32>
    %255 = vector.extract_strided_slice %254 {offsets = [0, 0], sizes = [2, 32], strides = [1, 1]} : vector<2x64xf32> to vector<2x32xf32>
    %cst_84 = arith.constant dense<0.000000e+00> : vector<2xf32>
    %256 = vector.multi_reduction <add>, %255, %cst_84 [1] : vector<2x32xf32> to vector<2xf32>
    %257 = vector.shape_cast %256 : vector<2xf32> to vector<2x1xf32>
    %258 = vector.extract_strided_slice %254 {offsets = [0, 32], sizes = [2, 32], strides = [1, 1]} : vector<2x64xf32> to vector<2x32xf32>
    %cst_85 = arith.constant dense<0.000000e+00> : vector<2xf32>
    %259 = vector.multi_reduction <add>, %258, %cst_85 [1] : vector<2x32xf32> to vector<2xf32>
    %260 = vector.shape_cast %259 : vector<2xf32> to vector<2x1xf32>
    %261 = arith.addf %68, %260 : vector<2x1xf32>
    %262 = arith.addf %95, %233 : vector<2x1xf32>
    %263 = arith.addf %122, %206 : vector<2x1xf32>
    %264 = arith.addf %149, %179 : vector<2x1xf32>
    %265 = arith.addf %176, %152 : vector<2x1xf32>
    %266 = arith.addf %203, %125 : vector<2x1xf32>
    %267 = arith.addf %230, %98 : vector<2x1xf32>
    %268 = arith.addf %257, %71 : vector<2x1xf32>
    %269 = tpu.concatenate %261, %262, %263, %264, %265, %266, %267, %268 in 1 : vector<2x1xf32>, vector<2x1xf32>, vector<2x1xf32>, vector<2x1xf32>, vector<2x1xf32>, vector<2x1xf32>, vector<2x1xf32>, vector<2x1xf32> -> vector<2x8xf32>
    %270 = vector.broadcast %42 : vector<1x1xf32> to vector<2x8xf32>
    %271 = arith.addf %269, %270 : vector<2x8xf32>
    %272 = arith.negf %271 : vector<2x8xf32>
    %273 = math.exp %272 : vector<2x8xf32>
    %cst_86 = arith.constant 1.000000e+00 : f32
    %274 = vector.broadcast %cst_86 : f32 to vector<2x8xf32>
    %275 = arith.addf %274, %273 : vector<2x8xf32>
    %276 = arith.divf %274, %275 : vector<2x8xf32>
    %c0_87 = arith.constant 0 : index
    %c0_88 = arith.constant 0 : index
    %277 = vector.load %arg6[%c0_87, %c0_88] : memref<2x8xf32, #tpu.memory_space<vmem>>, vector<2x8xf32>
    tpu.vector_store %arg6[%c0_87, %c0_88], %276 {strides = array<i32>} : memref<2x8xf32, #tpu.memory_space<vmem>>, vector<2x8xf32>,
    return
  }
}

</mosaic_0001>

<llo_original>
// kernel: tpu_custom_call.1
$region0: #{tpu_custom_call.1}
  #allocation0 [shape = 'u32[]', space=smem, size = 0x4, offset = 0x4, fixed_abs, tag = 'smem constant byte address 0x4 - core index']
  #allocation1 [shape = 'u32[144,128]{1,0:T(1,128)}', space=vmem, size = 0x12000, scoped, tag = 'internal scratch']
  #allocation2 [shape = 'f32[8,2,256]{2,1,0:T(2,128)}', space=vmem, size = 0x4000, scoped, tag = 'scratch operand']
  #allocation3 [shape = 'f32[1,1]{1,0:T(1,128)S(1)}', space=vmem, size = 0x200, scoped, tag = 'scoped memory for tpu_custom_call.1']
  %s0 = inlined_call_operand.hbm [shape: f32[16,38], index: 0, kind: input, shape index: {}]
  %s1 = inlined_call_operand.hbm [shape: f32[38,256], index: 1, kind: input, shape index: {}]
  %s2 = inlined_call_operand.hbm [shape: f32[64,256], index: 2, kind: input, shape index: {}]
  %s3 = inlined_call_operand.vmem [shape: f32[1,256], index: 3, kind: input, shape index: {}]
  %s4 = inlined_call_operand.vmem [shape: f32[1,64], index: 4, kind: input, shape index: {}]
  %s5 = inlined_call_operand.<no memory space> [shape: f32[1,1], index: 5, kind: input, shape index: {}]
  %s6 = inlined_call_operand.hbm [shape: f32[2,8], index: 6, kind: output, shape index: {}]
  %s7 = sld [smem:[#allocation0]]
  $region46: #{tpu_custom_call.1} parent=0
    _
  %s9 = ssub.s32 1, %s7
  %s10 = scalar_select 0, %s9, %s7
  %v11 = vstv %s5
  %12 = vst [vmem:[#allocation3] sm:$0x1] %v11
  $region1: #{tpu_custom_call.1} parent=0
    #allocation4 [shape = 'u8[8192]{0}', space=vmem, size = 0x2000, scoped, tag = 'input window, operand 0, single buffered']
    #allocation5 [shape = 's32[1]{0}', space=sflag, size = 0x4, scoped, tag = 'scoped memory for tpu_custom_call.1']
    #allocation6 [shape = 's32[1]{0}', space=sflag, size = 0x4, scoped, tag = 'scoped memory for tpu_custom_call.1']
    #allocation7 [shape = 'u8[40960]{0}', space=vmem, size = 0xa000, scoped, tag = 'input window, operand 1, single buffered']
    #allocation8 [shape = 's32[1]{0}', space=sflag, size = 0x4, scoped, tag = 'scoped memory for tpu_custom_call.1']
    #allocation9 [shape = 'u8[65536]{0}', space=vmem, size = 0x10000, scoped, tag = 'input window, operand 2, single buffered']
    #allocation10 [shape = 'u8[1024]{0}', space=vmem, size = 0x400, scoped, tag = 'output window, operand 0, single buffered']
    %13 = vsyncpa [#allocation5], 0
    %14 = vsyncpa [#allocation8], 0
    %15 = vsyncpa [#allocation6], 0
    // Predicated region
    $region2: #{tpu_custom_call.1} parent=1 // pred_check
      _
    $region3: #{tpu_custom_call.1} parent=1 // pred_check_branch
      %17 = sbr.rel (0) target = $region5
    $region4: #{tpu_custom_call.1} parent=1 // pred_region
      %s19 = ssub.s32 256, 256
      %20 = vsyncadd [#allocation5], %s19
      %s21 = sshll.u32 [#allocation4], 4
      %s22 = int_to_ptr.vmem [resolvable:$true] %s21
      %27 = dma.hbm_to_vmem [thread:$0]  %s0, 256, %s22, [#allocation5], 128, 128, 8
    $region5: #{tpu_custom_call.1} parent=1 // pred_fallthru
      _
    // Predicated region
    $region6: #{tpu_custom_call.1} parent=1 // pred_check
      _
    $region7: #{tpu_custom_call.1} parent=1 // pred_check_branch
      %29 = sbr.rel (0) target = $region9
    $region8: #{tpu_custom_call.1} parent=1 // pred_region
      %s31 = ssub.s32 1280, 1280
      %32 = vsyncadd [#allocation8], %s31
      %s33 = sshll.u32 [#allocation7], 4
      %s34 = int_to_ptr.vmem [resolvable:$true] %s33
      %39 = dma.hbm_to_vmem [thread:$0]  %s1, 1280, %s34, [#allocation8], 256, 256, 16
    $region9: #{tpu_custom_call.1} parent=1 // pred_fallthru
      _
    // Predicated region
    $region10: #{tpu_custom_call.1} parent=1 // pred_check
      _
    $region11: #{tpu_custom_call.1} parent=1 // pred_check_branch
      %41 = sbr.rel (0) target = $region13
    $region12: #{tpu_custom_call.1} parent=1 // pred_region
      %s43 = ssub.s32 2048, 2048
      %44 = vsyncadd [#allocation8], %s43
      %s45 = sshll.u32 [#allocation9], 4
      %s46 = int_to_ptr.vmem [resolvable:$true] %s45
      %51 = dma.hbm_to_vmem [thread:$0]  %s2, 2048, %s46, [#allocation8], 256, 256, 16
    $region13: #{tpu_custom_call.1} parent=1 // pred_fallthru
      _
    // Predicated region
    $region14: #{tpu_custom_call.1} parent=1 // pred_check
      _
    $region15: #{tpu_custom_call.1} parent=1 // pred_check_branch
      %53 = sbr.rel (0) target = $region17
    $region16: #{tpu_custom_call.1} parent=1 // pred_region
      _
    $region17: #{tpu_custom_call.1} parent=1 // pred_fallthru
      _
    // Predicated region
    $region18: #{tpu_custom_call.1} parent=1 // pred_check
      _
    $region19: #{tpu_custom_call.1} parent=1 // pred_check_branch
      %55 = sbr.rel (0) target = $region21
    $region20: #{tpu_custom_call.1} parent=1 // pred_region
      _
    $region21: #{tpu_custom_call.1} parent=1 // pred_fallthru
      _
    // Predicated region
    $region22: #{tpu_custom_call.1} parent=1 // pred_check
      _
    $region23: #{tpu_custom_call.1} parent=1 // pred_check_branch
      %57 = sbr.rel (0) target = $region25
    $region24: #{tpu_custom_call.1} parent=1 // pred_region
      _
    $region25: #{tpu_custom_call.1} parent=1 // pred_fallthru
      _
    // Predicated region
    $region26: #{tpu_custom_call.1} parent=1 // pred_check
      _
    $region27: #{tpu_custom_call.1} parent=1 // pred_check_branch
      %59 = sbr.rel (0) target = $region29
    $region28: #{tpu_custom_call.1} parent=1 // pred_region
      %60 = dma.done [#allocation5], 256
    $region29: #{tpu_custom_call.1} parent=1 // pred_fallthru
      _
    // Predicated region
    $region30: #{tpu_custom_call.1} parent=1 // pred_check
      _
    $region31: #{tpu_custom_call.1} parent=1 // pred_check_branch
      %62 = sbr.rel (0) target = $region33
    $region32: #{tpu_custom_call.1} parent=1 // pred_region
      %63 = dma.done [#allocation8], 1280
    $region33: #{tpu_custom_call.1} parent=1 // pred_fallthru
      _
    // Predicated region
    $region34: #{tpu_custom_call.1} parent=1 // pred_check
      _
    $region35: #{tpu_custom_call.1} parent=1 // pred_check_branch
      %65 = sbr.rel (0) target = $region37
    $region36: #{tpu_custom_call.1} parent=1 // pred_region
      %66 = dma.done [#allocation8], 2048
    $region37: #{tpu_custom_call.1} parent=1 // pred_fallthru
      _
    %v67 = vld [vmem:[#allocation4] sm:$0xff]
    %v68 = vld [vmem:[#allocation4 + $0x8] sm:$0xff]
    %v69 = vld [vmem:[#allocation7] sm:$0xff]
    %v70 = vld [vmem:[#allocation7 + $0x8] sm:$0xff]
    %v71 = vld [vmem:[#allocation7 + $0x10] sm:$0xff]
    %v72 = vld [vmem:[#allocation7 + $0x18] sm:$0xff]
    %v73 = vld [vmem:[#allocation7 + $0x20] sm:$0xff]
    %v74 = vld [vmem:[#allocation7 + $0x28] sm:$0xff]
    %v75 = vld [vmem:[#allocation7 + $0x30] sm:$0xff]
    %v76 = vld [vmem:[#allocation7 + $0x38] sm:$0xff]
    %v77 = vld [vmem:[#allocation7 + $0x40] sm:$0x3f]
    %v78 = vld [vmem:[#allocation7 + $0x48] sm:$0x3f]
    %v79 = vld [vmem:[%s3] sm:$0x3]
    %v81 = vlaneseq
    %v82 = vshrl.u32 %v81, 7
    %v83 = vsub.s32 0, %v82
    %v84 = vrot.slane %v79, %v83
    %v85 = vlaneseq
    %v86 = vshrl.u32 %v85, 7
    %v87 = vsub.s32 1, %v86
    %v88 = vrot.slane %v79, %v87
    %vm91 = vcmask 310272
    %v93 = vsel %vm91, %v67, 0
    %v96 = vsel %vm91, %v68, 0
    %vm98 = vcmask 1045504
    %v100 = vsel %vm98, %v77, 0
    %v103 = vsel %vm98, %v78, 0
    %105 = vmatprep.subr.mxu0 %v70
    %106 = vmatpush1.msra.mxu0 %v69
    %107 = vmatprep.subr.mxu0 %v72
    %108 = vmatpush1.msra.mxu0 %v71
    %109 = vmatprep.subr.mxu0 %v74
    %110 = vmatpush1.msra.mxu0 %v73
    %111 = vmatprep.subr.mxu0 %v76
    %112 = vmatpush1.msra.mxu0 %v75
    %113 = vmatprep.subr.mxu0 %v103
    %114 = vmatpush1.msra.mxu0 %v100
    %115 = vmatprep.subr.mxu0 0.0
    %116 = vmatpush1.msra.mxu0 0.0
    %117 = vmatprep.subr.mxu0 0.0
    %118 = vmatpush1.msra.mxu0 0.0
    %119 = vmatprep.subr.mxu0 0.0
    %120 = vmatpush1.msra.mxu0 0.0
    %121 = vmatprep.subr.mxu0 0.0
    %122 = vmatpush1.msra.mxu0 0.0
    %123 = vmatprep.subr.mxu0 0.0
    %124 = vmatpush1.msra.mxu0 0.0
    %125 = vmatprep.subr.mxu0 0.0
    %126 = vmatpush1.msra.mxu0 0.0
    %127 = vmatprep.subr.mxu0 0.0
    %128 = vmatpush1.msra.mxu0 0.0
    %129 = vmatprep.subr.mxu0 0.0
    %130 = vmatpush1.msra.mxu0 0.0
    %131 = vmatprep.subr.mxu0 0.0
    %132 = vmatpush1.msra.mxu0 0.0
    %133 = vmatprep.subr.mxu0 0.0
    %134 = vmatpush1.msra.mxu0 0.0
    %135 = vmatprep.subr.mxu0 0.0
    %136 = vmatpush1.msra.mxu0 0.0
    %137 = vmatprep.subr.mxu0 0.0
    %138 = vmatpush1.msra.mxu0 0.0
    %139 = vmatprep.subr.mxu0 0.0
    %140 = vmatpush1.msra.mxu0 0.0
    %141 = vmatprep.subr.mxu0 0.0
    %142 = vmatpush1.msra.mxu0 0.0
    %143 = vmatprep.subr.mxu0 0.0
    %144 = vmatpush1.msra.mxu0 0.0
    %145 = vmatprep.subr.mxu0 0.0
    %146 = vmatpush1.msra.mxu0 0.0
    %147 = vmatprep.subr.mxu0 0.0
    %148 = vmatpush1.msra.mxu0 0.0
    %149 = vmatprep.subr.mxu0 0.0
    %150 = vmatpush1.msra.mxu0 0.0
    %151 = vmatprep.subr.mxu0 0.0
    %152 = vmatpush1.msra.mxu0 0.0
    %153 = vmatprep.subr.mxu0 0.0
    %154 = vmatpush1.msra.mxu0 0.0
    %155 = vmatprep.subr.mxu0 0.0
    %156 = vmatpush1.msra.mxu0 0.0
    %157 = vmatprep.subr.mxu0 0.0
    %158 = vmatpush1.msra.mxu0 0.0
    %159 = vmatprep.subr.mxu0 0.0
    %160 = vmatpush1.msra.mxu0 0.0
    %161 = vmatprep.subr.mxu0 0.0
    %162 = vmatpush1.msra.mxu0 0.0
    %163 = vmatprep.subr.mxu0 0.0
    %164 = vmatpush1.msra.mxu0 0.0
    %165 = vmatprep.subr.mxu0 0.0
    %166 = vmatpush1.msra.mxu0 0.0
    %167 = vmatprep.subr.mxu0 0.0
    %168 = vmatpush1.msra.mxu0 0.0
    %169 = vmatprep.mubr.f32.mxu0 0.0
    %170 = vmatmul.mubr.f32.gmra.mrb[0].mxu0 %v93
    %v171 = vpop.f32.mrb[0].mxu0
    %v172 = vadd.f32 %v84, %v171
    %v173 = vpop.f32.mrb[0].mxu0
    %v174 = vadd.f32 %v88, %v173
    %175 = vmatprep.mubr.f32.mxu0 0.0
    %176 = vmatmul.mubr.f32.gmra.mrb[0].mxu0 %v96
    %v177 = vpop.f32.mrb[0].mxu0
    %v178 = vadd.f32 %v84, %v177
    %v179 = vpop.f32.mrb[0].mxu0
    %v180 = vadd.f32 %v88, %v179
    %181 = vdwg.mxu0
    %v184 = vcombine.low %v172, %v174
    %v186 = vunpack.c.l.s4 1983009808
    %v187 = vunpack.c.0.s8 %v186
    %v188 = vlaneseq
    %v189 = vshrl.u32 %v188, 7
    %v190 = vsub.s32 %v187, %v189
    %v191 = vrot.slane %v184, %v190
    %193 = vst [vmem:[#allocation2] sm:$0xf] %v191
    %v194 = vcombine.high %v191, %v191
    %s196 = scalar_lea.vmem [#allocation2], 4
    %197 = vst [vmem:[%s196] sm:$0xf] %v194
    %v198 = vcombine.high %v172, %v174
    %v200 = vunpack.c.l.s4 1983009808
    %v201 = vunpack.c.0.s8 %v200
    %v202 = vlaneseq
    %v203 = vshrl.u32 %v202, 7
    %v204 = vsub.s32 %v201, %v203
    %v205 = vrot.slane %v198, %v204
    %s207 = scalar_lea.vmem [#allocation2], 8
    %208 = vst [vmem:[%s207] sm:$0xf] %v205
    %v209 = vcombine.high %v205, %v205
    %s211 = scalar_lea.vmem [#allocation2], 12
    %212 = vst [vmem:[%s211] sm:$0xf] %v209
    %v215 = vcombine.low %v178, %v180
    %v217 = vunpack.c.l.s4 1983009808
    %v218 = vunpack.c.0.s8 %v217
    %v219 = vlaneseq
    %v220 = vshrl.u32 %v219, 7
    %v221 = vsub.s32 %v218, %v220
    %v222 = vrot.slane %v215, %v221
    %s224 = scalar_lea.vmem [#allocation2], 16
    %225 = vst [vmem:[%s224] sm:$0xf] %v222
    %v226 = vcombine.high %v222, %v222
    %s228 = scalar_lea.vmem [#allocation2], 20
    %229 = vst [vmem:[%s228] sm:$0xf] %v226
    %v230 = vcombine.high %v178, %v180
    %v232 = vunpack.c.l.s4 1983009808
    %v233 = vunpack.c.0.s8 %v232
    %v234 = vlaneseq
    %v235 = vshrl.u32 %v234, 7
    %v236 = vsub.s32 %v233, %v235
    %v237 = vrot.slane %v230, %v236
    %s239 = scalar_lea.vmem [#allocation2], 24
    %240 = vst [vmem:[%s239] sm:$0xf] %v237
    %v241 = vcombine.high %v237, %v237
    %s243 = scalar_lea.vmem [#allocation2], 28
    %244 = vst [vmem:[%s243] sm:$0xf] %v241
    %v245 = vld [vmem:[#allocation9] sm:$0xff]
    %v246 = vld [vmem:[#allocation9 + $0x8] sm:$0xff]
    %v247 = vld [vmem:[#allocation9 + $0x10] sm:$0xff]
    %v248 = vld [vmem:[#allocation9 + $0x18] sm:$0xff]
    %v249 = vld [vmem:[#allocation9 + $0x20] sm:$0xff]
    %v250 = vld [vmem:[#allocation9 + $0x28] sm:$0xff]
    %v251 = vld [vmem:[#allocation9 + $0x30] sm:$0xff]
    %v252 = vld [vmem:[#allocation9 + $0x38] sm:$0xff]
    %v253 = vld [vmem:[#allocation9 + $0x40] sm:$0xff]
    %v254 = vld [vmem:[#allocation9 + $0x48] sm:$0xff]
    %v255 = vld [vmem:[#allocation9 + $0x50] sm:$0xff]
    %v256 = vld [vmem:[#allocation9 + $0x58] sm:$0xff]
    %v257 = vld [vmem:[#allocation9 + $0x60] sm:$0xff]
    %v258 = vld [vmem:[#allocation9 + $0x68] sm:$0xff]
    %v259 = vld [vmem:[#allocation9 + $0x70] sm:$0xff]
    %v260 = vld [vmem:[#allocation9 + $0x78] sm:$0xff]
    %v261 = vld [vmem:[%s4] sm:$0x1]
    %v263 = vlaneseq
    %v264 = vshrl.u32 %v263, 7
    %v265 = vsub.s32 0, %v264
    %v266 = vrot.slane %v261, %v265
    %v268 = vld [vmem:[#allocation3] sm:$0x1]
    %v269 = vld [vmem:[#allocation2] sm:$0xf]
    %vm270 = vcmask 523264
    %v272 = vsel %vm270, 0.0, 0
    %274 = vmatprep.subr.mxu0 %v246
    %275 = vmatpush1.msra.mxu0 %v245
    %276 = vmatprep.subr.mxu0 %v248
    %277 = vmatpush1.msra.mxu0 %v247
    %278 = vmatprep.subr.mxu0 %v250
    %279 = vmatpush1.msra.mxu0 %v249
    %280 = vmatprep.subr.mxu0 %v252
    %281 = vmatpush1.msra.mxu0 %v251
    %282 = vmatprep.subr.mxu0 %v254
    %283 = vmatpush1.msra.mxu0 %v253
    %284 = vmatprep.subr.mxu0 %v256
    %285 = vmatpush1.msra.mxu0 %v255
    %286 = vmatprep.subr.mxu0 %v258
    %287 = vmatpush1.msra.mxu0 %v257
    %288 = vmatprep.subr.mxu0 %v260
    %289 = vmatpush1.msra.mxu0 %v259
    %290 = vmatprep.subr.mxu0 0.0
    %291 = vmatpush1.msra.mxu0 0.0
    %292 = vmatprep.subr.mxu0 0.0
    %293 = vmatpush1.msra.mxu0 0.0
    %294 = vmatprep.subr.mxu0 0.0
    %295 = vmatpush1.msra.mxu0 0.0
    %296 = vmatprep.subr.mxu0 0.0
    %297 = vmatpush1.msra.mxu0 0.0
    %298 = vmatprep.subr.mxu0 0.0
    %299 = vmatpush1.msra.mxu0 0.0
    %300 = vmatprep.subr.mxu0 0.0
    %301 = vmatpush1.msra.mxu0 0.0
    %302 = vmatprep.subr.mxu0 0.0
    %303 = vmatpush1.msra.mxu0 0.0
    %304 = vmatprep.subr.mxu0 0.0
    %305 = vmatpush1.msra.mxu0 0.0
    %306 = vmatprep.subr.mxu0 0.0
    %307 = vmatpush1.msra.mxu0 0.0
    %308 = vmatprep.subr.mxu0 0.0
    %309 = vmatpush1.msra.mxu0 0.0
    %310 = vmatprep.subr.mxu0 0.0
    %311 = vmatpush1.msra.mxu0 0.0
    %312 = vmatprep.subr.mxu0 0.0
    %313 = vmatpush1.msra.mxu0 0.0
    %314 = vmatprep.subr.mxu0 0.0
    %315 = vmatpush1.msra.mxu0 0.0
    %316 = vmatprep.subr.mxu0 0.0
    %317 = vmatpush1.msra.mxu0 0.0
    %318 = vmatprep.subr.mxu0 0.0
    %319 = vmatpush1.msra.mxu0 0.0
    %320 = vmatprep.subr.mxu0 0.0
    %321 = vmatpush1.msra.mxu0 0.0
    %322 = vmatprep.subr.mxu0 0.0
    %323 = vmatpush1.msra.mxu0 0.0
    %324 = vmatprep.subr.mxu0 0.0
    %325 = vmatpush1.msra.mxu0 0.0
    %326 = vmatprep.subr.mxu0 0.0
    %327 = vmatpush1.msra.mxu0 0.0
    %328 = vmatprep.subr.mxu0 0.0
    %329 = vmatpush1.msra.mxu0 0.0
    %330 = vmatprep.subr.mxu0 0.0
    %331 = vmatpush1.msra.mxu0 0.0
    %332 = vmatprep.subr.mxu0 0.0
    %333 = vmatpush1.msra.mxu0 0.0
    %334 = vmatprep.subr.mxu0 0.0
    %335 = vmatpush1.msra.mxu0 0.0
    %336 = vmatprep.subr.mxu0 0.0
    %337 = vmatpush1.msra.mxu0 0.0
    %338 = vmatprep.mubr.f32.mxu0 0.0
    %339 = vmatmul.mubr.f32.gmra.mrb[0].mxu0 %v272
    %v340 = vpop.f32.mrb[0].mxu0
    %v341 = vadd.f32 0.0, %v340
    %v342 = vpop.f32.mrb[0].mxu0
    %v343 = vadd.f32 0.0, %v342
    %344 = vdwg.mxu0
    %v347 = vcombine.low %v341, %v343
    %v349 = vunpack.c.l.s4 1983009808
    %v350 = vunpack.c.0.s8 %v349
    %v351 = vlaneseq
    %v352 = vshrl.u32 %v351, 7
    %v353 = vsub.s32 %v350, %v352
    %v354 = vrot.slane %v347, %v353
    %v356 = vadd.f32 %v269, %v354
    %v357 = vxor.u32 %v356, 2147483648
    %v358 = vmul.f32 %v357, 1.442695
    %v359 = vpow.pop %v358
    %v360 = vadd.f32 %v359, 1.0
    %v361 = vrcp.pop %v360
    %v362 = vmul.f32 1.0, %v361
    %364 = vrot.lane.b32.xlu0 %v356, 64
    %v365 = vpop.permute.xlu0 %364
    %v366 = vrot.slane %v365, 2
    %v368 = vtanh.pop %v366
    %v369 = vmul.f32 %v362, 0.0
    %v370 = vmul.f32 %v362, %v368
    %372 = vrot.lane.b32.xlu0 %v370, 64
    %v373 = vpop.permute.xlu0 %372
    %v375 = vadd.f32 %v369, %v373
    %v376 = vtanh.pop %v375
    %v378 = vrot.slane %v362, 2
    %381 = vrot.lane.b32.xlu0 %v376, 64
    %v382 = vpop.permute.xlu0 %381
    %v384 = vmul.f32 %v378, %v382
    %v385 = vmul.f32 %v384, %v266
    %vm386 = vcmask 254976
    %v387 = vsel %vm386, %v385, 0.0
    %388 = vadd.xlane.f32.xlu0 %v387
    %v389 = vpop.xlane.xlu0 %388
    %v392 = vunpack.c.l.s4 1983009808
    %v393 = vunpack.c.0.s8 %v392
    %v394 = vlaneseq
    %v395 = vshrl.u32 %v394, 7
    %v396 = vsub.s32 %v393, %v395
    %v397 = vrot.slane %v385, %v396
    %398 = vrot.lane.b32.xlu0 %v397, 96
    %v399 = vpop.permute.xlu0 %398
    %v401 = vsel %vm386, %v399, 0.0
    %402 = vadd.xlane.f32.xlu0 %v401
    %v403 = vpop.xlane.xlu0 %402
    %v404 = vld [vmem:[%s196] sm:$0xf]
    %v406 = vsel %vm270, %v384, 0
    %408 = vmatprep.subr.mxu0 %v246
    %409 = vmatpush1.msra.mxu0 %v245
    %410 = vmatprep.subr.mxu0 %v248
    %411 = vmatpush1.msra.mxu0 %v247
    %412 = vmatprep.subr.mxu0 %v250
    %413 = vmatpush1.msra.mxu0 %v249
    %414 = vmatprep.subr.mxu0 %v252
    %415 = vmatpush1.msra.mxu0 %v251
    %416 = vmatprep.subr.mxu0 %v254
    %417 = vmatpush1.msra.mxu0 %v253
    %418 = vmatprep.subr.mxu0 %v256
    %419 = vmatpush1.msra.mxu0 %v255
    %420 = vmatprep.subr.mxu0 %v258
    %421 = vmatpush1.msra.mxu0 %v257
    %422 = vmatprep.subr.mxu0 %v260
    %423 = vmatpush1.msra.mxu0 %v259
    %424 = vmatprep.subr.mxu0 0.0
    %425 = vmatpush1.msra.mxu0 0.0
    %426 = vmatprep.subr.mxu0 0.0
    %427 = vmatpush1.msra.mxu0 0.0
    %428 = vmatprep.subr.mxu0 0.0
    %429 = vmatpush1.msra.mxu0 0.0
    %430 = vmatprep.subr.mxu0 0.0
    %431 = vmatpush1.msra.mxu0 0.0
    %432 = vmatprep.subr.mxu0 0.0
    %433 = vmatpush1.msra.mxu0 0.0
    %434 = vmatprep.subr.mxu0 0.0
    %435 = vmatpush1.msra.mxu0 0.0
    %436 = vmatprep.subr.mxu0 0.0
    %437 = vmatpush1.msra.mxu0 0.0
    %438 = vmatprep.subr.mxu0 0.0
    %439 = vmatpush1.msra.mxu0 0.0
    %440 = vmatprep.subr.mxu0 0.0
    %441 = vmatpush1.msra.mxu0 0.0
    %442 = vmatprep.subr.mxu0 0.0
    %443 = vmatpush1.msra.mxu0 0.0
    %444 = vmatprep.subr.mxu0 0.0
    %445 = vmatpush1.msra.mxu0 0.0
    %446 = vmatprep.subr.mxu0 0.0
    %447 = vmatpush1.msra.mxu0 0.0
    %448 = vmatprep.subr.mxu0 0.0
    %449 = vmatpush1.msra.mxu0 0.0
    %450 = vmatprep.subr.mxu0 0.0
    %451 = vmatpush1.msra.mxu0 0.0
    %452 = vmatprep.subr.mxu0 0.0
    %453 = vmatpush1.msra.mxu0 0.0
    %454 = vmatprep.subr.mxu0 0.0
    %455 = vmatpush1.msra.mxu0 0.0
    %456 = vmatprep.subr.mxu0 0.0
    %457 = vmatpush1.msra.mxu0 0.0
    %458 = vmatprep.subr.mxu0 0.0
    %459 = vmatpush1.msra.mxu0 0.0
    %460 = vmatprep.subr.mxu0 0.0
    %461 = vmatpush1.msra.mxu0 0.0
    %462 = vmatprep.subr.mxu0 0.0
    %463 = vmatpush1.msra.mxu0 0.0
    %464 = vmatprep.subr.mxu0 0.0
    %465 = vmatpush1.msra.mxu0 0.0
    %466 = vmatprep.subr.mxu0 0.0
    %467 = vmatpush1.msra.mxu0 0.0
    %468 = vmatprep.subr.mxu0 0.0
    %469 = vmatpush1.msra.mxu0 0.0
    %470 = vmatprep.subr.mxu0 0.0
    %471 = vmatpush1.msra.mxu0 0.0
    %472 = vmatprep.mubr.f32.mxu0 0.0
    %473 = vmatmul.mubr.f32.gmra.mrb[0].mxu0 %v406
    %v474 = vpop.f32.mrb[0].mxu0
    %v475 = vadd.f32 0.0, %v474
    %v476 = vpop.f32.mrb[0].mxu0
    %v477 = vadd.f32 0.0, %v476
    %478 = vdwg.mxu0
    %v481 = vcombine.low %v475, %v477
    %v483 = vunpack.c.l.s4 1983009808
    %v484 = vunpack.c.0.s8 %v483
    %v485 = vlaneseq
    %v486 = vshrl.u32 %v485, 7
    %v487 = vsub.s32 %v484, %v486
    %v488 = vrot.slane %v481, %v487
    %v490 = vadd.f32 %v404, %v488
    %v491 = vxor.u32 %v490, 2147483648
    %v492 = vmul.f32 %v491, 1.442695
    %v493 = vpow.pop %v492
    %v494 = vadd.f32 %v493, 1.0
    %v495 = vrcp.pop %v494
    %v496 = vmul.f32 1.0, %v495
    %498 = vrot.lane.b32.xlu0 %v490, 64
    %v499 = vpop.permute.xlu0 %498
    %v500 = vrot.slane %v499, 2
    %v502 = vtanh.pop %v500
    %v503 = vmul.f32 %v496, %v375
    %v504 = vmul.f32 %v496, %v502
    %506 = vrot.lane.b32.xlu0 %v504, 64
    %v507 = vpop.permute.xlu0 %506
    %v509 = vadd.f32 %v503, %v507
    %v510 = vtanh.pop %v509
    %v512 = vrot.slane %v496, 2
    %515 = vrot.lane.b32.xlu0 %v510, 64
    %v516 = vpop.permute.xlu0 %515
    %v518 = vmul.f32 %v512, %v516
    %v519 = vmul.f32 %v518, %v266
    %v520 = vsel %vm386, %v519, 0.0
    %521 = vadd.xlane.f32.xlu0 %v520
    %v522 = vpop.xlane.xlu0 %521
    %v525 = vunpack.c.l.s4 1983009808
    %v526 = vunpack.c.0.s8 %v525
    %v527 = vlaneseq
    %v528 = vshrl.u32 %v527, 7
    %v529 = vsub.s32 %v526, %v528
    %v530 = vrot.slane %v519, %v529
    %531 = vrot.lane.b32.xlu0 %v530, 96
    %v532 = vpop.permute.xlu0 %531
    %v534 = vsel %vm386, %v532, 0.0
    %535 = vadd.xlane.f32.xlu0 %v534
    %v536 = vpop.xlane.xlu0 %535
    %v537 = vld [vmem:[%s207] sm:$0xf]
    %v539 = vsel %vm270, %v518, 0
    %541 = vmatprep.subr.mxu0 %v246
    %542 = vmatpush1.msra.mxu0 %v245
    %543 = vmatprep.subr.mxu0 %v248
    %544 = vmatpush1.msra.mxu0 %v247
    %545 = vmatprep.subr.mxu0 %v250
    %546 = vmatpush1.msra.mxu0 %v249
    %547 = vmatprep.subr.mxu0 %v252
    %548 = vmatpush1.msra.mxu0 %v251
    %549 = vmatprep.subr.mxu0 %v254
    %550 = vmatpush1.msra.mxu0 %v253
    %551 = vmatprep.subr.mxu0 %v256
    %552 = vmatpush1.msra.mxu0 %v255
    %553 = vmatprep.subr.mxu0 %v258
    %554 = vmatpush1.msra.mxu0 %v257
    %555 = vmatprep.subr.mxu0 %v260
    %556 = vmatpush1.msra.mxu0 %v259
    %557 = vmatprep.subr.mxu0 0.0
    %558 = vmatpush1.msra.mxu0 0.0
    %559 = vmatprep.subr.mxu0 0.0
    %560 = vmatpush1.msra.mxu0 0.0
    %561 = vmatprep.subr.mxu0 0.0
    %562 = vmatpush1.msra.mxu0 0.0
    %563 = vmatprep.subr.mxu0 0.0
    %564 = vmatpush1.msra.mxu0 0.0
    %565 = vmatprep.subr.mxu0 0.0
    %566 = vmatpush1.msra.mxu0 0.0
    %567 = vmatprep.subr.mxu0 0.0
    %568 = vmatpush1.msra.mxu0 0.0
    %569 = vmatprep.subr.mxu0 0.0
    %570 = vmatpush1.msra.mxu0 0.0
    %571 = vmatprep.subr.mxu0 0.0
    %572 = vmatpush1.msra.mxu0 0.0
    %573 = vmatprep.subr.mxu0 0.0
    %574 = vmatpush1.msra.mxu0 0.0
    %575 = vmatprep.subr.mxu0 0.0
    %576 = vmatpush1.msra.mxu0 0.0
    %577 = vmatprep.subr.mxu0 0.0
    %578 = vmatpush1.msra.mxu0 0.0
    %579 = vmatprep.subr.mxu0 0.0
    %580 = vmatpush1.msra.mxu0 0.0
    %581 = vmatprep.subr.mxu0 0.0
    %582 = vmatpush1.msra.mxu0 0.0
    %583 = vmatprep.subr.mxu0 0.0
    %584 = vmatpush1.msra.mxu0 0.0
    %585 = vmatprep.subr.mxu0 0.0
    %586 = vmatpush1.msra.mxu0 0.0
    %587 = vmatprep.subr.mxu0 0.0
    %588 = vmatpush1.msra.mxu0 0.0
    %589 = vmatprep.subr.mxu0 0.0
    %590 = vmatpush1.msra.mxu0 0.0
    %591 = vmatprep.subr.mxu0 0.0
    %592 = vmatpush1.msra.mxu0 0.0
    %593 = vmatprep.subr.mxu0 0.0
    %594 = vmatpush1.msra.mxu0 0.0
    %595 = vmatprep.subr.mxu0 0.0
    %596 = vmatpush1.msra.mxu0 0.0
    %597 = vmatprep.subr.mxu0 0.0
    %598 = vmatpush1.msra.mxu0 0.0
    %599 = vmatprep.subr.mxu0 0.0
    %600 = vmatpush1.msra.mxu0 0.0
    %601 = vmatprep.subr.mxu0 0.0
    %602 = vmatpush1.msra.mxu0 0.0
    %603 = vmatprep.subr.mxu0 0.0
    %604 = vmatpush1.msra.mxu0 0.0
    %605 = vmatprep.mubr.f32.mxu0 0.0
    %606 = vmatmul.mubr.f32.gmra.mrb[0].mxu0 %v539
    %v607 = vpop.f32.mrb[0].mxu0
    %v608 = vadd.f32 0.0, %v607
    %v609 = vpop.f32.mrb[0].mxu0
    %v610 = vadd.f32 0.0, %v609
    %611 = vdwg.mxu0
    %v614 = vcombine.low %v608, %v610
    %v616 = vunpack.c.l.s4 1983009808
    %v617 = vunpack.c.0.s8 %v616
    %v618 = vlaneseq
    %v619 = vshrl.u32 %v618, 7
    %v620 = vsub.s32 %v617, %v619
    %v621 = vrot.slane %v614, %v620
    %v623 = vadd.f32 %v537, %v621
    %v624 = vxor.u32 %v623, 2147483648
    %v625 = vmul.f32 %v624, 1.442695
    %v626 = vpow.pop %v625
    %v627 = vadd.f32 %v626, 1.0
    %v628 = vrcp.pop %v627
    %v629 = vmul.f32 1.0, %v628
    %631 = vrot.lane.b32.xlu0 %v623, 64
    %v632 = vpop.permute.xlu0 %631
    %v633 = vrot.slane %v632, 2
    %v635 = vtanh.pop %v633
    %v636 = vmul.f32 %v629, %v509
    %v637 = vmul.f32 %v629, %v635
    %639 = vrot.lane.b32.xlu0 %v637, 64
    %v640 = vpop.permute.xlu0 %639
    %v642 = vadd.f32 %v636, %v640
    %v643 = vtanh.pop %v642
    %v645 = vrot.slane %v629, 2
    %648 = vrot.lane.b32.xlu0 %v643, 64
    %v649 = vpop.permute.xlu0 %648
    %v651 = vmul.f32 %v645, %v649
    %v652 = vmul.f32 %v651, %v266
    %v653 = vsel %vm386, %v652, 0.0
    %654 = vadd.xlane.f32.xlu0 %v653
    %v655 = vpop.xlane.xlu0 %654
    %v658 = vunpack.c.l.s4 1983009808
    %v659 = vunpack.c.0.s8 %v658
    %v660 = vlaneseq
    %v661 = vshrl.u32 %v660, 7
    %v662 = vsub.s32 %v659, %v661
    %v663 = vrot.slane %v652, %v662
    %664 = vrot.lane.b32.xlu0 %v663, 96
    %v665 = vpop.permute.xlu0 %664
    %v667 = vsel %vm386, %v665, 0.0
    %668 = vadd.xlane.f32.xlu0 %v667
    %v669 = vpop.xlane.xlu0 %668
    %v670 = vld [vmem:[%s211] sm:$0xf]
    %v672 = vsel %vm270, %v651, 0
    %674 = vmatprep.subr.mxu0 %v246
    %675 = vmatpush1.msra.mxu0 %v245
    %676 = vmatprep.subr.mxu0 %v248
    %677 = vmatpush1.msra.mxu0 %v247
    %678 = vmatprep.subr.mxu0 %v250
    %679 = vmatpush1.msra.mxu0 %v249
    %680 = vmatprep.subr.mxu0 %v252
    %681 = vmatpush1.msra.mxu0 %v251
    %682 = vmatprep.subr.mxu0 %v254
    %683 = vmatpush1.msra.mxu0 %v253
    %684 = vmatprep.subr.mxu0 %v256
    %685 = vmatpush1.msra.mxu0 %v255
    %686 = vmatprep.subr.mxu0 %v258
    %687 = vmatpush1.msra.mxu0 %v257
    %688 = vmatprep.subr.mxu0 %v260
    %689 = vmatpush1.msra.mxu0 %v259
    %690 = vmatprep.subr.mxu0 0.0
    %691 = vmatpush1.msra.mxu0 0.0
    %692 = vmatprep.subr.mxu0 0.0
    %693 = vmatpush1.msra.mxu0 0.0
    %694 = vmatprep.subr.mxu0 0.0
    %695 = vmatpush1.msra.mxu0 0.0
    %696 = vmatprep.subr.mxu0 0.0
    %697 = vmatpush1.msra.mxu0 0.0
    %698 = vmatprep.subr.mxu0 0.0
    %699 = vmatpush1.msra.mxu0 0.0
    %700 = vmatprep.subr.mxu0 0.0
    %701 = vmatpush1.msra.mxu0 0.0
    %702 = vmatprep.subr.mxu0 0.0
    %703 = vmatpush1.msra.mxu0 0.0
    %704 = vmatprep.subr.mxu0 0.0
    %705 = vmatpush1.msra.mxu0 0.0
    %706 = vmatprep.subr.mxu0 0.0
    %707 = vmatpush1.msra.mxu0 0.0
    %708 = vmatprep.subr.mxu0 0.0
    %709 = vmatpush1.msra.mxu0 0.0
    %710 = vmatprep.subr.mxu0 0.0
    %711 = vmatpush1.msra.mxu0 0.0
    %712 = vmatprep.subr.mxu0 0.0
    %713 = vmatpush1.msra.mxu0 0.0
    %714 = vmatprep.subr.mxu0 0.0
    %715 = vmatpush1.msra.mxu0 0.0
    %716 = vmatprep.subr.mxu0 0.0
    %717 = vmatpush1.msra.mxu0 0.0
    %718 = vmatprep.subr.mxu0 0.0
    %719 = vmatpush1.msra.mxu0 0.0
    %720 = vmatprep.subr.mxu0 0.0
    %721 = vmatpush1.msra.mxu0 0.0
    %722 = vmatprep.subr.mxu0 0.0
    %723 = vmatpush1.msra.mxu0 0.0
    %724 = vmatprep.subr.mxu0 0.0
    %725 = vmatpush1.msra.mxu0 0.0
    %726 = vmatprep.subr.mxu0 0.0
    %727 = vmatpush1.msra.mxu0 0.0
    %728 = vmatprep.subr.mxu0 0.0
    %729 = vmatpush1.msra.mxu0 0.0
    %730 = vmatprep.subr.mxu0 0.0
    %731 = vmatpush1.msra.mxu0 0.0
    %732 = vmatprep.subr.mxu0 0.0
    %733 = vmatpush1.msra.mxu0 0.0
    %734 = vmatprep.subr.mxu0 0.0
    %735 = vmatpush1.msra.mxu0 0.0
    %736 = vmatprep.subr.mxu0 0.0
    %737 = vmatpush1.msra.mxu0 0.0
    %738 = vmatprep.mubr.f32.mxu0 0.0
    %739 = vmatmul.mubr.f32.gmra.mrb[0].mxu0 %v672
    %v740 = vpop.f32.mrb[0].mxu0
    %v741 = vadd.f32 0.0, %v740
    %v742 = vpop.f32.mrb[0].mxu0
    %v743 = vadd.f32 0.0, %v742
    %744 = vdwg.mxu0
    %v747 = vcombine.low %v741, %v743
    %v749 = vunpack.c.l.s4 1983009808
    %v750 = vunpack.c.0.s8 %v749
    %v751 = vlaneseq
    %v752 = vshrl.u32 %v751, 7
    %v753 = vsub.s32 %v750, %v752
    %v754 = vrot.slane %v747, %v753
    %v756 = vadd.f32 %v670, %v754
    %v757 = vxor.u32 %v756, 2147483648
    %v758 = vmul.f32 %v757, 1.442695
    %v759 = vpow.pop %v758
    %v760 = vadd.f32 %v759, 1.0
    %v761 = vrcp.pop %v760
    %v762 = vmul.f32 1.0, %v761
    %764 = vrot.lane.b32.xlu0 %v756, 64
    %v765 = vpop.permute.xlu0 %764
    %v766 = vrot.slane %v765, 2
    %v768 = vtanh.pop %v766
    %v769 = vmul.f32 %v762, %v642
    %v770 = vmul.f32 %v762, %v768
    %772 = vrot.lane.b32.xlu0 %v770, 64
    %v773 = vpop.permute.xlu0 %772
    %v775 = vadd.f32 %v769, %v773
    %v776 = vtanh.pop %v775
    %v778 = vrot.slane %v762, 2
    %781 = vrot.lane.b32.xlu0 %v776, 64
    %v782 = vpop.permute.xlu0 %781
    %v784 = vmul.f32 %v778, %v782
    %v785 = vmul.f32 %v784, %v266
    %v786 = vsel %vm386, %v785, 0.0
    %787 = vadd.xlane.f32.xlu0 %v786
    %v788 = vpop.xlane.xlu0 %787
    %v791 = vunpack.c.l.s4 1983009808
    %v792 = vunpack.c.0.s8 %v791
    %v793 = vlaneseq
    %v794 = vshrl.u32 %v793, 7
    %v795 = vsub.s32 %v792, %v794
    %v796 = vrot.slane %v785, %v795
    %797 = vrot.lane.b32.xlu0 %v796, 96
    %v798 = vpop.permute.xlu0 %797
    %v800 = vsel %vm386, %v798, 0.0
    %801 = vadd.xlane.f32.xlu0 %v800
    %v802 = vpop.xlane.xlu0 %801
    %v803 = vld [vmem:[%s224] sm:$0xf]
    %v805 = vsel %vm270, %v784, 0
    %807 = vmatprep.subr.mxu0 %v246
    %808 = vmatpush1.msra.mxu0 %v245
    %809 = vmatprep.subr.mxu0 %v248
    %810 = vmatpush1.msra.mxu0 %v247
    %811 = vmatprep.subr.mxu0 %v250
    %812 = vmatpush1.msra.mxu0 %v249
    %813 = vmatprep.subr.mxu0 %v252
    %814 = vmatpush1.msra.mxu0 %v251
    %815 = vmatprep.subr.mxu0 %v254
    %816 = vmatpush1.msra.mxu0 %v253
    %817 = vmatprep.subr.mxu0 %v256
    %818 = vmatpush1.msra.mxu0 %v255
    %819 = vmatprep.subr.mxu0 %v258
    %820 = vmatpush1.msra.mxu0 %v257
    %821 = vmatprep.subr.mxu0 %v260
    %822 = vmatpush1.msra.mxu0 %v259
    %823 = vmatprep.subr.mxu0 0.0
    %824 = vmatpush1.msra.mxu0 0.0
    %825 = vmatprep.subr.mxu0 0.0
    %826 = vmatpush1.msra.mxu0 0.0
    %827 = vmatprep.subr.mxu0 0.0
    %828 = vmatpush1.msra.mxu0 0.0
    %829 = vmatprep.subr.mxu0 0.0
    %830 = vmatpush1.msra.mxu0 0.0
    %831 = vmatprep.subr.mxu0 0.0
    %832 = vmatpush1.msra.mxu0 0.0
    %833 = vmatprep.subr.mxu0 0.0
    %834 = vmatpush1.msra.mxu0 0.0
    %835 = vmatprep.subr.mxu0 0.0
    %836 = vmatpush1.msra.mxu0 0.0
    %837 = vmatprep.subr.mxu0 0.0
    %838 = vmatpush1.msra.mxu0 0.0
    %839 = vmatprep.subr.mxu0 0.0
    %840 = vmatpush1.msra.mxu0 0.0
    %841 = vmatprep.subr.mxu0 0.0
    %842 = vmatpush1.msra.mxu0 0.0
    %843 = vmatprep.subr.mxu0 0.0
    %844 = vmatpush1.msra.mxu0 0.0
    %845 = vmatprep.subr.mxu0 0.0
    %846 = vmatpush1.msra.mxu0 0.0
    %847 = vmatprep.subr.mxu0 0.0
    %848 = vmatpush1.msra.mxu0 0.0
    %849 = vmatprep.subr.mxu0 0.0
    %850 = vmatpush1.msra.mxu0 0.0
    %851 = vmatprep.subr.mxu0 0.0
    %852 = vmatpush1.msra.mxu0 0.0
    %853 = vmatprep.subr.mxu0 0.0
    %854 = vmatpush1.msra.mxu0 0.0
    %855 = vmatprep.subr.mxu0 0.0
    %856 = vmatpush1.msra.mxu0 0.0
    %857 = vmatprep.subr.mxu0 0.0
    %858 = vmatpush1.msra.mxu0 0.0
    %859 = vmatprep.subr.mxu0 0.0
    %860 = vmatpush1.msra.mxu0 0.0
    %861 = vmatprep.subr.mxu0 0.0
    %862 = vmatpush1.msra.mxu0 0.0
    %863 = vmatprep.subr.mxu0 0.0
    %864 = vmatpush1.msra.mxu0 0.0
    %865 = vmatprep.subr.mxu0 0.0
    %866 = vmatpush1.msra.mxu0 0.0
    %867 = vmatprep.subr.mxu0 0.0
    %868 = vmatpush1.msra.mxu0 0.0
    %869 = vmatprep.subr.mxu0 0.0
    %870 = vmatpush1.msra.mxu0 0.0
    %871 = vmatprep.mubr.f32.mxu0 0.0
    %872 = vmatmul.mubr.f32.gmra.mrb[0].mxu0 %v805
    %v873 = vpop.f32.mrb[0].mxu0
    %v874 = vadd.f32 0.0, %v873
    %v875 = vpop.f32.mrb[0].mxu0
    %v876 = vadd.f32 0.0, %v875
    %877 = vdwg.mxu0
    %v880 = vcombine.low %v874, %v876
    %v882 = vunpack.c.l.s4 1983009808
    %v883 = vunpack.c.0.s8 %v882
    %v884 = vlaneseq
    %v885 = vshrl.u32 %v884, 7
    %v886 = vsub.s32 %v883, %v885
    %v887 = vrot.slane %v880, %v886
    %v889 = vadd.f32 %v803, %v887
    %v890 = vxor.u32 %v889, 2147483648
    %v891 = vmul.f32 %v890, 1.442695
    %v892 = vpow.pop %v891
    %v893 = vadd.f32 %v892, 1.0
    %v894 = vrcp.pop %v893
    %v895 = vmul.f32 1.0, %v894
    %897 = vrot.lane.b32.xlu0 %v889, 64
    %v898 = vpop.permute.xlu0 %897
    %v899 = vrot.slane %v898, 2
    %v901 = vtanh.pop %v899
    %v902 = vmul.f32 %v895, %v775
    %v903 = vmul.f32 %v895, %v901
    %905 = vrot.lane.b32.xlu0 %v903, 64
    %v906 = vpop.permute.xlu0 %905
    %v908 = vadd.f32 %v902, %v906
    %v909 = vtanh.pop %v908
    %v911 = vrot.slane %v895, 2
    %914 = vrot.lane.b32.xlu0 %v909, 64
    %v915 = vpop.permute.xlu0 %914
    %v917 = vmul.f32 %v911, %v915
    %v918 = vmul.f32 %v917, %v266
    %v919 = vsel %vm386, %v918, 0.0
    %920 = vadd.xlane.f32.xlu0 %v919
    %v921 = vpop.xlane.xlu0 %920
    %v924 = vunpack.c.l.s4 1983009808
    %v925 = vunpack.c.0.s8 %v924
    %v926 = vlaneseq
    %v927 = vshrl.u32 %v926, 7
    %v928 = vsub.s32 %v925, %v927
    %v929 = vrot.slane %v918, %v928
    %930 = vrot.lane.b32.xlu0 %v929, 96
    %v931 = vpop.permute.xlu0 %930
    %v933 = vsel %vm386, %v931, 0.0
    %934 = vadd.xlane.f32.xlu0 %v933
    %v935 = vpop.xlane.xlu0 %934
    %v936 = vld [vmem:[%s228] sm:$0xf]
    %v938 = vsel %vm270, %v917, 0
    %940 = vmatprep.subr.mxu0 %v246
    %941 = vmatpush1.msra.mxu0 %v245
    %942 = vmatprep.subr.mxu0 %v248
    %943 = vmatpush1.msra.mxu0 %v247
    %944 = vmatprep.subr.mxu0 %v250
    %945 = vmatpush1.msra.mxu0 %v249
    %946 = vmatprep.subr.mxu0 %v252
    %947 = vmatpush1.msra.mxu0 %v251
    %948 = vmatprep.subr.mxu0 %v254
    %949 = vmatpush1.msra.mxu0 %v253
    %950 = vmatprep.subr.mxu0 %v256
    %951 = vmatpush1.msra.mxu0 %v255
    %952 = vmatprep.subr.mxu0 %v258
    %953 = vmatpush1.msra.mxu0 %v257
    %954 = vmatprep.subr.mxu0 %v260
    %955 = vmatpush1.msra.mxu0 %v259
    %956 = vmatprep.subr.mxu0 0.0
    %957 = vmatpush1.msra.mxu0 0.0
    %958 = vmatprep.subr.mxu0 0.0
    %959 = vmatpush1.msra.mxu0 0.0
    %960 = vmatprep.subr.mxu0 0.0
    %961 = vmatpush1.msra.mxu0 0.0
    %962 = vmatprep.subr.mxu0 0.0
    %963 = vmatpush1.msra.mxu0 0.0
    %964 = vmatprep.subr.mxu0 0.0
    %965 = vmatpush1.msra.mxu0 0.0
    %966 = vmatprep.subr.mxu0 0.0
    %967 = vmatpush1.msra.mxu0 0.0
    %968 = vmatprep.subr.mxu0 0.0
    %969 = vmatpush1.msra.mxu0 0.0
    %970 = vmatprep.subr.mxu0 0.0
    %971 = vmatpush1.msra.mxu0 0.0
    %972 = vmatprep.subr.mxu0 0.0
    %973 = vmatpush1.msra.mxu0 0.0
    %974 = vmatprep.subr.mxu0 0.0
    %975 = vmatpush1.msra.mxu0 0.0
    %976 = vmatprep.subr.mxu0 0.0
    %977 = vmatpush1.msra.mxu0 0.0
    %978 = vmatprep.subr.mxu0 0.0
    %979 = vmatpush1.msra.mxu0 0.0
    %980 = vmatprep.subr.mxu0 0.0
    %981 = vmatpush1.msra.mxu0 0.0
    %982 = vmatprep.subr.mxu0 0.0
    %983 = vmatpush1.msra.mxu0 0.0
    %984 = vmatprep.subr.mxu0 0.0
    %985 = vmatpush1.msra.mxu0 0.0
    %986 = vmatprep.subr.mxu0 0.0
    %987 = vmatpush1.msra.mxu0 0.0
    %988 = vmatprep.subr.mxu0 0.0
    %989 = vmatpush1.msra.mxu0 0.0
    %990 = vmatprep.subr.mxu0 0.0
    %991 = vmatpush1.msra.mxu0 0.0
    %992 = vmatprep.subr.mxu0 0.0
    %993 = vmatpush1.msra.mxu0 0.0
    %994 = vmatprep.subr.mxu0 0.0
    %995 = vmatpush1.msra.mxu0 0.0
    %996 = vmatprep.subr.mxu0 0.0
    %997 = vmatpush1.msra.mxu0 0.0
    %998 = vmatprep.subr.mxu0 0.0
    %999 = vmatpush1.msra.mxu0 0.0
    %1000 = vmatprep.subr.mxu0 0.0
    %1001 = vmatpush1.msra.mxu0 0.0
    %1002 = vmatprep.subr.mxu0 0.0
    %1003 = vmatpush1.msra.mxu0 0.0
    %1004 = vmatprep.mubr.f32.mxu0 0.0
    %1005 = vmatmul.mubr.f32.gmra.mrb[0].mxu0 %v938
    %v1006 = vpop.f32.mrb[0].mxu0
    %v1007 = vadd.f32 0.0, %v1006
    %v1008 = vpop.f32.mrb[0].mxu0
    %v1009 = vadd.f32 0.0, %v1008
    %1010 = vdwg.mxu0
    %v1013 = vcombine.low %v1007, %v1009
    %v1015 = vunpack.c.l.s4 1983009808
    %v1016 = vunpack.c.0.s8 %v1015
    %v1017 = vlaneseq
    %v1018 = vshrl.u32 %v1017, 7
    %v1019 = vsub.s32 %v1016, %v1018
    %v1020 = vrot.slane %v1013, %v1019
    %v1022 = vadd.f32 %v936, %v1020
    %v1023 = vxor.u32 %v1022, 2147483648
    %v1024 = vmul.f32 %v1023, 1.442695
    %v1025 = vpow.pop %v1024
    %v1026 = vadd.f32 %v1025, 1.0
    %v1027 = vrcp.pop %v1026
    %v1028 = vmul.f32 1.0, %v1027
    %1030 = vrot.lane.b32.xlu0 %v1022, 64
    %v1031 = vpop.permute.xlu0 %1030
    %v1032 = vrot.slane %v1031, 2
    %v1034 = vtanh.pop %v1032
    %v1035 = vmul.f32 %v1028, %v908
    %v1036 = vmul.f32 %v1028, %v1034
    %1038 = vrot.lane.b32.xlu0 %v1036, 64
    %v1039 = vpop.permute.xlu0 %1038
    %v1041 = vadd.f32 %v1035, %v1039
    %v1042 = vtanh.pop %v1041
    %v1044 = vrot.slane %v1028, 2
    %1047 = vrot.lane.b32.xlu0 %v1042, 64
    %v1048 = vpop.permute.xlu0 %1047
    %v1050 = vmul.f32 %v1044, %v1048
    %v1051 = vmul.f32 %v1050, %v266
    %v1052 = vsel %vm386, %v1051, 0.0
    %1053 = vadd.xlane.f32.xlu0 %v1052
    %v1054 = vpop.xlane.xlu0 %1053
    %v1057 = vunpack.c.l.s4 1983009808
    %v1058 = vunpack.c.0.s8 %v1057
    %v1059 = vlaneseq
    %v1060 = vshrl.u32 %v1059, 7
    %v1061 = vsub.s32 %v1058, %v1060
    %v1062 = vrot.slane %v1051, %v1061
    %1063 = vrot.lane.b32.xlu0 %v1062, 96
    %v1064 = vpop.permute.xlu0 %1063
    %v1066 = vsel %vm386, %v1064, 0.0
    %1067 = vadd.xlane.f32.xlu0 %v1066
    %v1068 = vpop.xlane.xlu0 %1067
    %v1069 = vld [vmem:[%s239] sm:$0xf]
    %v1071 = vsel %vm270, %v1050, 0
    %1073 = vmatprep.subr.mxu0 %v246
    %1074 = vmatpush1.msra.mxu0 %v245
    %1075 = vmatprep.subr.mxu0 %v248
    %1076 = vmatpush1.msra.mxu0 %v247
    %1077 = vmatprep.subr.mxu0 %v250
    %1078 = vmatpush1.msra.mxu0 %v249
    %1079 = vmatprep.subr.mxu0 %v252
    %1080 = vmatpush1.msra.mxu0 %v251
    %1081 = vmatprep.subr.mxu0 %v254
    %1082 = vmatpush1.msra.mxu0 %v253
    %1083 = vmatprep.subr.mxu0 %v256
    %1084 = vmatpush1.msra.mxu0 %v255
    %1085 = vmatprep.subr.mxu0 %v258
    %1086 = vmatpush1.msra.mxu0 %v257
    %1087 = vmatprep.subr.mxu0 %v260
    %1088 = vmatpush1.msra.mxu0 %v259
    %1089 = vmatprep.subr.mxu0 0.0
    %1090 = vmatpush1.msra.mxu0 0.0
    %1091 = vmatprep.subr.mxu0 0.0
    %1092 = vmatpush1.msra.mxu0 0.0
    %1093 = vmatprep.subr.mxu0 0.0
    %1094 = vmatpush1.msra.mxu0 0.0
    %1095 = vmatprep.subr.mxu0 0.0
    %1096 = vmatpush1.msra.mxu0 0.0
    %1097 = vmatprep.subr.mxu0 0.0
    %1098 = vmatpush1.msra.mxu0 0.0
    %1099 = vmatprep.subr.mxu0 0.0
    %1100 = vmatpush1.msra.mxu0 0.0
    %1101 = vmatprep.subr.mxu0 0.0
    %1102 = vmatpush1.msra.mxu0 0.0
    %1103 = vmatprep.subr.mxu0 0.0
    %1104 = vmatpush1.msra.mxu0 0.0
    %1105 = vmatprep.subr.mxu0 0.0
    %1106 = vmatpush1.msra.mxu0 0.0
    %1107 = vmatprep.subr.mxu0 0.0
    %1108 = vmatpush1.msra.mxu0 0.0
    %1109 = vmatprep.subr.mxu0 0.0
    %1110 = vmatpush1.msra.mxu0 0.0
    %1111 = vmatprep.subr.mxu0 0.0
    %1112 = vmatpush1.msra.mxu0 0.0
    %1113 = vmatprep.subr.mxu0 0.0
    %1114 = vmatpush1.msra.mxu0 0.0
    %1115 = vmatprep.subr.mxu0 0.0
    %1116 = vmatpush1.msra.mxu0 0.0
    %1117 = vmatprep.subr.mxu0 0.0
    %1118 = vmatpush1.msra.mxu0 0.0
    %1119 = vmatprep.subr.mxu0 0.0
    %1120 = vmatpush1.msra.mxu0 0.0
    %1121 = vmatprep.subr.mxu0 0.0
    %1122 = vmatpush1.msra.mxu0 0.0
    %1123 = vmatprep.subr.mxu0 0.0
    %1124 = vmatpush1.msra.mxu0 0.0
    %1125 = vmatprep.subr.mxu0 0.0
    %1126 = vmatpush1.msra.mxu0 0.0
    %1127 = vmatprep.subr.mxu0 0.0
    %1128 = vmatpush1.msra.mxu0 0.0
    %1129 = vmatprep.subr.mxu0 0.0
    %1130 = vmatpush1.msra.mxu0 0.0
    %1131 = vmatprep.subr.mxu0 0.0
    %1132 = vmatpush1.msra.mxu0 0.0
    %1133 = vmatprep.subr.mxu0 0.0
    %1134 = vmatpush1.msra.mxu0 0.0
    %1135 = vmatprep.subr.mxu0 0.0
    %1136 = vmatpush1.msra.mxu0 0.0
    %1137 = vmatprep.mubr.f32.mxu0 0.0
    %1138 = vmatmul.mubr.f32.gmra.mrb[0].mxu0 %v1071
    %v1139 = vpop.f32.mrb[0].mxu0
    %v1140 = vadd.f32 0.0, %v1139
    %v1141 = vpop.f32.mrb[0].mxu0
    %v1142 = vadd.f32 0.0, %v1141
    %1143 = vdwg.mxu0
    %v1146 = vcombine.low %v1140, %v1142
    %v1148 = vunpack.c.l.s4 1983009808
    %v1149 = vunpack.c.0.s8 %v1148
    %v1150 = vlaneseq
    %v1151 = vshrl.u32 %v1150, 7
    %v1152 = vsub.s32 %v1149, %v1151
    %v1153 = vrot.slane %v1146, %v1152
    %v1155 = vadd.f32 %v1069, %v1153
    %v1156 = vxor.u32 %v1155, 2147483648
    %v1157 = vmul.f32 %v1156, 1.442695
    %v1158 = vpow.pop %v1157
    %v1159 = vadd.f32 %v1158, 1.0
    %v1160 = vrcp.pop %v1159
    %v1161 = vmul.f32 1.0, %v1160
    %1163 = vrot.lane.b32.xlu0 %v1155, 64
    %v1164 = vpop.permute.xlu0 %1163
    %v1165 = vrot.slane %v1164, 2
    %v1167 = vtanh.pop %v1165
    %v1168 = vmul.f32 %v1161, %v1041
    %v1169 = vmul.f32 %v1161, %v1167
    %1171 = vrot.lane.b32.xlu0 %v1169, 64
    %v1172 = vpop.permute.xlu0 %1171
    %v1174 = vadd.f32 %v1168, %v1172
    %v1175 = vtanh.pop %v1174
    %v1177 = vrot.slane %v1161, 2
    %1180 = vrot.lane.b32.xlu0 %v1175, 64
    %v1181 = vpop.permute.xlu0 %1180
    %v1183 = vmul.f32 %v1177, %v1181
    %v1184 = vmul.f32 %v1183, %v266
    %v1185 = vsel %vm386, %v1184, 0.0
    %1186 = vadd.xlane.f32.xlu0 %v1185
    %v1187 = vpop.xlane.xlu0 %1186
    %v1190 = vunpack.c.l.s4 1983009808
    %v1191 = vunpack.c.0.s8 %v1190
    %v1192 = vlaneseq
    %v1193 = vshrl.u32 %v1192, 7
    %v1194 = vsub.s32 %v1191, %v1193
    %v1195 = vrot.slane %v1184, %v1194
    %1196 = vrot.lane.b32.xlu0 %v1195, 96
    %v1197 = vpop.permute.xlu0 %1196
    %v1199 = vsel %vm386, %v1197, 0.0
    %1200 = vadd.xlane.f32.xlu0 %v1199
    %v1201 = vpop.xlane.xlu0 %1200
    %v1202 = vld [vmem:[%s243] sm:$0xf]
    %v1204 = vsel %vm270, %v1183, 0
    %1206 = vmatprep.subr.mxu0 %v246
    %1207 = vmatpush1.msra.mxu0 %v245
    %1208 = vmatprep.subr.mxu0 %v248
    %1209 = vmatpush1.msra.mxu0 %v247
    %1210 = vmatprep.subr.mxu0 %v250
    %1211 = vmatpush1.msra.mxu0 %v249
    %1212 = vmatprep.subr.mxu0 %v252
    %1213 = vmatpush1.msra.mxu0 %v251
    %1214 = vmatprep.subr.mxu0 %v254
    %1215 = vmatpush1.msra.mxu0 %v253
    %1216 = vmatprep.subr.mxu0 %v256
    %1217 = vmatpush1.msra.mxu0 %v255
    %1218 = vmatprep.subr.mxu0 %v258
    %1219 = vmatpush1.msra.mxu0 %v257
    %1220 = vmatprep.subr.mxu0 %v260
    %1221 = vmatpush1.msra.mxu0 %v259
    %1222 = vmatprep.subr.mxu0 0.0
    %1223 = vmatpush1.msra.mxu0 0.0
    %1224 = vmatprep.subr.mxu0 0.0
    %1225 = vmatpush1.msra.mxu0 0.0
    %1226 = vmatprep.subr.mxu0 0.0
    %1227 = vmatpush1.msra.mxu0 0.0
    %1228 = vmatprep.subr.mxu0 0.0
    %1229 = vmatpush1.msra.mxu0 0.0
    %1230 = vmatprep.subr.mxu0 0.0
    %1231 = vmatpush1.msra.mxu0 0.0
    %1232 = vmatprep.subr.mxu0 0.0
    %1233 = vmatpush1.msra.mxu0 0.0
    %1234 = vmatprep.subr.mxu0 0.0
    %1235 = vmatpush1.msra.mxu0 0.0
    %1236 = vmatprep.subr.mxu0 0.0
    %1237 = vmatpush1.msra.mxu0 0.0
    %1238 = vmatprep.subr.mxu0 0.0
    %1239 = vmatpush1.msra.mxu0 0.0
    %1240 = vmatprep.subr.mxu0 0.0
    %1241 = vmatpush1.msra.mxu0 0.0
    %1242 = vmatprep.subr.mxu0 0.0
    %1243 = vmatpush1.msra.mxu0 0.0
    %1244 = vmatprep.subr.mxu0 0.0
    %1245 = vmatpush1.msra.mxu0 0.0
    %1246 = vmatprep.subr.mxu0 0.0
    %1247 = vmatpush1.msra.mxu0 0.0
    %1248 = vmatprep.subr.mxu0 0.0
    %1249 = vmatpush1.msra.mxu0 0.0
    %1250 = vmatprep.subr.mxu0 0.0
    %1251 = vmatpush1.msra.mxu0 0.0
    %1252 = vmatprep.subr.mxu0 0.0
    %1253 = vmatpush1.msra.mxu0 0.0
    %1254 = vmatprep.subr.mxu0 0.0
    %1255 = vmatpush1.msra.mxu0 0.0
    %1256 = vmatprep.subr.mxu0 0.0
    %1257 = vmatpush1.msra.mxu0 0.0
    %1258 = vmatprep.subr.mxu0 0.0
    %1259 = vmatpush1.msra.mxu0 0.0
    %1260 = vmatprep.subr.mxu0 0.0
    %1261 = vmatpush1.msra.mxu0 0.0
    %1262 = vmatprep.subr.mxu0 0.0
    %1263 = vmatpush1.msra.mxu0 0.0
    %1264 = vmatprep.subr.mxu0 0.0
    %1265 = vmatpush1.msra.mxu0 0.0
    %1266 = vmatprep.subr.mxu0 0.0
    %1267 = vmatpush1.msra.mxu0 0.0
    %1268 = vmatprep.subr.mxu0 0.0
    %1269 = vmatpush1.msra.mxu0 0.0
    %1270 = vmatprep.mubr.f32.mxu0 0.0
    %1271 = vmatmul.mubr.f32.gmra.mrb[0].mxu0 %v1204
    %v1272 = vpop.f32.mrb[0].mxu0
    %v1273 = vadd.f32 0.0, %v1272
    %v1274 = vpop.f32.mrb[0].mxu0
    %v1275 = vadd.f32 0.0, %v1274
    %1276 = vdwg.mxu0
    %v1279 = vcombine.low %v1273, %v1275
    %v1281 = vunpack.c.l.s4 1983009808
    %v1282 = vunpack.c.0.s8 %v1281
    %v1283 = vlaneseq
    %v1284 = vshrl.u32 %v1283, 7
    %v1285 = vsub.s32 %v1282, %v1284
    %v1286 = vrot.slane %v1279, %v1285
    %v1288 = vadd.f32 %v1202, %v1286
    %v1289 = vxor.u32 %v1288, 2147483648
    %v1290 = vmul.f32 %v1289, 1.442695
    %v1291 = vpow.pop %v1290
    %v1292 = vadd.f32 %v1291, 1.0
    %v1293 = vrcp.pop %v1292
    %v1294 = vmul.f32 1.0, %v1293
    %1296 = vrot.lane.b32.xlu0 %v1288, 64
    %v1297 = vpop.permute.xlu0 %1296
    %v1298 = vrot.slane %v1297, 2
    %v1300 = vtanh.pop %v1298
    %v1301 = vmul.f32 %v1294, %v1174
    %v1302 = vmul.f32 %v1294, %v1300
    %1304 = vrot.lane.b32.xlu0 %v1302, 64
    %v1305 = vpop.permute.xlu0 %1304
    %v1307 = vadd.f32 %v1301, %v1305
    %v1308 = vtanh.pop %v1307
    %v1310 = vrot.slane %v1294, 2
    %1313 = vrot.lane.b32.xlu0 %v1308, 64
    %v1314 = vpop.permute.xlu0 %1313
    %v1316 = vmul.f32 %v1310, %v1314
    %v1317 = vmul.f32 %v1316, %v266
    %v1318 = vsel %vm386, %v1317, 0.0
    %1319 = vadd.xlane.f32.xlu0 %v1318
    %v1320 = vpop.xlane.xlu0 %1319
    %v1323 = vunpack.c.l.s4 1983009808
    %v1324 = vunpack.c.0.s8 %v1323
    %v1325 = vlaneseq
    %v1326 = vshrl.u32 %v1325, 7
    %v1327 = vsub.s32 %v1324, %v1326
    %v1328 = vrot.slane %v1317, %v1327
    %1329 = vrot.lane.b32.xlu0 %v1328, 96
    %v1330 = vpop.permute.xlu0 %1329
    %v1332 = vsel %vm386, %v1330, 0.0
    %1333 = vadd.xlane.f32.xlu0 %v1332
    %v1334 = vpop.xlane.xlu0 %1333
    %v1335 = vadd.f32 %v389, %v1334
    %v1336 = vadd.f32 %v522, %v1201
    %v1337 = vadd.f32 %v655, %v1068
    %v1338 = vadd.f32 %v788, %v935
    %v1339 = vadd.f32 %v921, %v802
    %v1340 = vadd.f32 %v1054, %v669
    %v1341 = vadd.f32 %v1187, %v536
    %v1342 = vadd.f32 %v1320, %v403
    %vm1343 = vcmask 7168
    %v1344 = vsel %vm1343, %v1335, %v1336
    %vm1345 = vcmask 15360
    %v1346 = vsel %vm1345, %v1344, %v1337
    %vm1347 = vcmask 23552
    %v1348 = vsel %vm1347, %v1346, %v1338
    %vm1349 = vcmask 31744
    %v1350 = vsel %vm1349, %v1348, %v1339
    %vm1351 = vcmask 39936
    %v1352 = vsel %vm1351, %v1350, %v1340
    %vm1353 = vcmask 48128
    %v1354 = vsel %vm1353, %v1352, %v1341
    %vm1355 = vcmask 56320
    %v1356 = vsel %vm1355, %v1354, %v1342
    %v1358 = vlaneseq
    %v1359 = vshrl.u32 %v1358, 7
    %v1360 = vsub.s32 0, %v1359
    %v1361 = vrot.slane %v268, %v1360
    %1362 = vset.pattern.permute.xlu0 0
    %1363 = vperm.xlu0 %1362, %v1361
    %v1364 = vpop.permute.xlu0 %1363
    %v1366 = vadd.f32 %v1356, %v1364
    %v1367 = vxor.u32 %v1366, 2147483648
    %v1368 = vmul.f32 %v1367, 1.442695
    %v1369 = vpow.pop %v1368
    %v1370 = vadd.f32 %v1369, 1.0
    %v1371 = vrcp.pop %v1370
    %v1372 = vmul.f32 1.0, %v1371
    %vm1373 = vcmask 58368
    %1374 = vst.msk [vmem:[#allocation10] sm:$0x3] %vm1373, %v1372
    // Predicated region
    $region38: #{tpu_custom_call.1} parent=1 // pred_check
      _
    $region39: #{tpu_custom_call.1} parent=1 // pred_check_branch
      %1376 = sbr.rel (0) target = $region41
    $region40: #{tpu_custom_call.1} parent=1 // pred_region
      %s1378 = ssub.s32 32, 32
      %1379 = vsyncadd [#allocation6], %s1378
      %s1381 = sshll.u32 [#allocation10], 4
      %s1382 = int_to_ptr.vmem [resolvable:$true] %s1381
      %1384 = dma.vmem_to_hbm [thread:$0]  %s1382, 32, %s6, [#allocation6]
    $region41: #{tpu_custom_call.1} parent=1 // pred_fallthru
      _
    // Predicated region
    $region42: #{tpu_custom_call.1} parent=1 // pred_check
      _
    $region43: #{tpu_custom_call.1} parent=1 // pred_check_branch
      %1386 = sbr.rel (0) target = $region45
    $region44: #{tpu_custom_call.1} parent=1 // pred_region
      %1387 = dma.done [#allocation6], 32
    $region45: #{tpu_custom_call.1} parent=1 // pred_fallthru
      _
    %1388 = vsyncpa [#allocation5], 1
    %1389 = vsyncpa [#allocation8], 1
    %1390 = vsyncpa [#allocation6], 1

</llo_original>
